<compile_context>
chip_gen: v7x
topology: tpu7x:2x2x1
jax: 0.10.0
libtpu: 0.0.40
codegen_flags: <defaults>
</compile_context>

<pallas_src>
import jax
import jax.numpy as jnp
from jax.experimental import pallas as pl
from jax.experimental.pallas import tpu as pltpu

EPS = 1e-5
OUT_DIM = 50     # classifier width in the module
OUT_PAD = 128    # lane-dense padded width for the last layer
D_IN = 2048      # bn0 / linear0 input width


def _bn_train_fused(h, gamma, beta):
    """BatchNorm1d (training mode) as a single fused scale/shift (all f32)."""
    n = h.shape[0]
    inv_n = 1.0 / n
    s1 = jnp.sum(h, axis=0, keepdims=True)
    s2 = jnp.sum(h * h, axis=0, keepdims=True)
    mu = s1 * inv_n
    # Biased variance (PyTorch train mode); clamp against cancellation-driven
    # negatives before rsqrt.
    var = jnp.maximum(s2 * inv_n - mu * mu, 0.0)
    scale = gamma * jax.lax.rsqrt(var + EPS)
    shift = beta - mu * scale
    return h * scale + shift


def network_kernel(
    # VMEM inputs
    x_ref, bn_ref,
    # HBM inputs (manually DMA'd)
    w0_hbm, w1_hbm, w23_hbm,
    # output
    out_ref,
    # scratch
    w0_buf, w1_buf, w23_buf, sem,
):
    # Kick off ALL weight DMAs immediately so they overlap the BN/matmul
    # compute below instead of being serialized in the Pallas prologue.
    cp0 = pltpu.make_async_copy(w0_hbm, w0_buf, sem.at[0])
    cp1 = pltpu.make_async_copy(w1_hbm, w1_buf, sem.at[1])
    cp23 = pltpu.make_async_copy(w23_hbm, w23_buf, sem.at[2])
    cp0.start()
    cp1.start()
    cp23.start()

    d0 = w0_buf.shape[1]      # 256
    d1 = w1_buf.shape[1]      # 512
    d2 = w23_buf.shape[1]     # 128 (== padded classifier width)

    # Unpack the BN/bias slab (packed once at init time).
    p = bn_ref
    g0, b0 = p[0:1, :], p[1:2, :]
    g1, b1 = p[2:3, :d0], p[3:4, :d0]
    g2, b2 = p[4:5, :d1], p[5:6, :d1]
    g3, b3 = p[6:7, :d2], p[7:8, :d2]
    c3 = p[8:9, :d2]

    x = x_ref[...].astype(jnp.float32)

    # bn0
    h = _bn_train_fused(x, g0, b0)

    # linear0 -> bn1 -> relu   (bf16 operands, f32 accumulation)
    # Linear biases c0/c1/c2 are omitted: they are exactly cancelled by the
    # mean subtraction of the following training-mode BatchNorm.
    cp0.wait()
    h = jnp.dot(h.astype(jnp.bfloat16), w0_buf[...],
                preferred_element_type=jnp.float32)
    h = jnp.maximum(_bn_train_fused(h, g1, b1), 0.0)

    # linear1 -> bn2 -> relu
    cp1.wait()
    h = jnp.dot(h.astype(jnp.bfloat16), w1_buf[...],
                preferred_element_type=jnp.float32)
    h = jnp.maximum(_bn_train_fused(h, g2, b2), 0.0)

    # linear2 -> bn3 -> relu   (w2 is rows [0, d1) of the packed buffer)
    cp23.wait()
    h = jnp.dot(h.astype(jnp.bfloat16), w23_buf[:d1, :],
                preferred_element_type=jnp.float32)
    h = jnp.maximum(_bn_train_fused(h, g3, b3), 0.0)

    # linear3 (w3 is rows [d1, d1+d2) of the packed buffer; output padded to
    # 128 lanes so the final matmul and store are lane-dense)
    out = jnp.dot(h.astype(jnp.bfloat16), w23_buf[d1:, :],
                  preferred_element_type=jnp.float32) + c3
    out_ref[...] = out.astype(out_ref.dtype)


@jax.jit
def network_forward(x, kernel_params):
    """kernel_params: (bn_pack, w0, w1, w23) built by init_params."""
    bn_pack, w0, w1, w23 = kernel_params
    B = x.shape[0]
    out_pad_dim = w23.shape[1]

    vmem = pl.BlockSpec(memory_space=pltpu.MemorySpace.VMEM)
    hbm = pl.BlockSpec(memory_space=pl.ANY)

    out_pad = pl.pallas_call(
        network_kernel,
        out_shape=jax.ShapeDtypeStruct((B, out_pad_dim), jnp.float32),
        in_specs=[vmem, vmem, hbm, hbm, hbm],
        out_specs=vmem,
        scratch_shapes=[
            pltpu.VMEM(w0.shape, w0.dtype),
            pltpu.VMEM(w1.shape, w1.dtype),
            pltpu.VMEM(w23.shape, w23.dtype),
            pltpu.SemaphoreType.DMA((3,)),
        ],
    )(x, bn_pack, w0, w1, w23)

    return out_pad[:, :OUT_DIM]


def init_params(key, structure_scale=0.125):
    """Deterministic synthetic parameters mirroring the module's __init__ shapes.

    Returns (kernel_params, ref_params):
      kernel_params = (bn_pack, w0, w1, w23)  -- packed/padded, ready for the kernel
      ref_params    = full PyTorch-style parameter tuple for the JAX reference
    Linear weights are (F_in, F_out) in bfloat16 (MXU operand dtype); biases
    and BN affine parameters are float32.
    """
    d_in = D_IN
    d0 = int(2048 * structure_scale)   # 256
    d1 = int(4096 * structure_scale)   # 512
    d2 = int(1024 * structure_scale)   # 128
    d_out = OUT_DIM

    ks = jax.random.split(key, 16)

    def lin(kw, kb, fi, fo):
        bound = 1.0 / jnp.sqrt(fi)
        w = jax.random.uniform(kw, (fi, fo), jnp.float32, -bound, bound)
        b = jax.random.uniform(kb, (1, fo), jnp.float32, -bound, bound)
        return w.astype(jnp.bfloat16), b

    def bn(kg, kb, f):
        g = 1.0 + 0.1 * jax.random.normal(kg, (1, f), jnp.float32)
        b = 0.1 * jax.random.normal(kb, (1, f), jnp.float32)
        return g, b

    g0, b0 = bn(ks[0], ks[1], d_in)
    w0, c0 = lin(ks[2], ks[3], d_in, d0)
    g1, b1 = bn(ks[4], ks[5], d0)
    w1, c1 = lin(ks[6], ks[7], d0, d1)
    g2, b2 = bn(ks[8], ks[9], d1)
    w2, c2 = lin(ks[10], ks[11], d1, d2)
    g3, b3 = bn(ks[12], ks[13], d2)
    w3, c3 = lin(ks[14], ks[15], d2, d_out)

    # Pre-pad the classifier head to a lane-dense width (done once here, not
    # per call).
    pad = OUT_PAD - d_out
    w3p = jnp.pad(w3, ((0, 0), (0, pad)))
    c3p = jnp.pad(c3, ((0, 0), (0, pad)))

    # Pack w2 | w3p into one contiguous buffer -> one DMA, one wait.
    # (Relies on d2 == OUT_PAD == 128 for structure_scale=0.125.)
    assert w2.shape[1] == w3p.shape[1] == OUT_PAD
    w23 = jnp.concatenate([w2, w3p], axis=0)          # (d1 + d2, 128) bf16

    # Pack all BN affine params + c3 into a single (9, 2048) f32 slab so the
    # serialized Pallas prologue issues one small DMA instead of nine.
    def row(v):
        return jnp.pad(v, ((0, 0), (0, d_in - v.shape[1])))
    bn_pack = jnp.concatenate(
        [row(g0), row(b0), row(g1), row(b1),
         row(g2), row(b2), row(g3), row(b3), row(c3p)], axis=0)

    kernel_params = (bn_pack, w0, w1, w23)
    ref_params = (g0, b0, w0, c0, g1, b1, w1, c1, g2, b2,
                  w2, c2, g3, b3, w3, c3)
    return kernel_params, ref_params


def reference_forward(x, ref_params):
    """Pure-JAX reference with PyTorch semantics (incl. the BN-cancelled biases)."""
    (g0, b0, w0, c0, g1, b1, w1, c1, g2, b2,
     w2, c2, g3, b3, w3, c3) = ref_params

    def bn(h, g, b):
        mu = jnp.mean(h, axis=0, keepdims=True)
        var = jnp.mean((h - mu) ** 2, axis=0, keepdims=True)
        return (h - mu) / jnp.sqrt(var + EPS) * g + b

    def lin(h, w, c):
        return jnp.dot(h.astype(jnp.bfloat16), w,
                       preferred_element_type=jnp.float32) + c

    h = bn(x.astype(jnp.float32), g0, b0)
    h = jnp.maximum(bn(lin(h, w0, c0), g1, b1), 0.0)
    h = jnp.maximum(bn(lin(h, w1, c1), g2, b2), 0.0)
    h = jnp.maximum(bn(lin(h, w2, c2), g3, b3), 0.0)
    return lin(h, w3, c3)


if __name__ == "__main__":
    key = jax.random.PRNGKey(0)
    kx, kp = jax.random.split(key)

    # Input feature dim must be 2048 (bn0/linear0); hidden dims shrunk via
    # structure_scale=0.125 -> 256 / 512 / 128; output 50.
    B = 8
    x = jax.random.normal(kx, (B, D_IN), jnp.float32)
    kernel_params, ref_params = init_params(kp, structure_scale=0.125)

    out = network_forward(x, kernel_params)
    out = jax.block_until_ready(out)

    ref = reference_forward(x, ref_params)
    assert out.shape == (B, OUT_DIM), out.shape
    max_err = float(jnp.max(jnp.abs(out - ref)))
    assert jnp.allclose(out, ref, atol=2e-3, rtol=2e-3), max_err

    print("KERNEL_OK")
</pallas_src>

<mosaic_0001>
module attributes {stable_mosaic.version = 11 : i64} {
  func.func @network_kernel(%arg0: memref<8x2048xf32, #tpu.memory_space<vmem>>, %arg1: memref<9x2048xf32, #tpu.memory_space<vmem>>, %arg2: memref<2048x256xbf16, #tpu.memory_space<any>>, %arg3: memref<256x512xbf16, #tpu.memory_space<any>>, %arg4: memref<640x128xbf16, #tpu.memory_space<any>>, %arg5: memref<8x128xf32, #tpu.memory_space<vmem>>, %arg6: memref<2048x256xbf16, #tpu.memory_space<vmem>>, %arg7: memref<256x512xbf16, #tpu.memory_space<vmem>>, %arg8: memref<640x128xbf16, #tpu.memory_space<vmem>>, %arg9: memref<3x!tpu.dma_semaphore, #tpu.memory_space<semaphore_mem>>) attributes {dimension_semantics = [], scalar_prefetch = 0 : i64, scratch_operands = 4 : i64, tpu.core_type = #tpu.core_type<tc>} {
    %c0_i32 = arith.constant 0 : i32
    %0 = tpu.memref_slice %arg9[%c0_i32] : memref<3x!tpu.dma_semaphore, #tpu.memory_space<semaphore_mem>> -> memref<1x!tpu.dma_semaphore, #tpu.memory_space<semaphore_mem>>
    %1 = tpu.memref_squeeze %0 : memref<1x!tpu.dma_semaphore, #tpu.memory_space<semaphore_mem>> -> memref<!tpu.dma_semaphore, #tpu.memory_space<semaphore_mem>>
    tpu.enqueue_dma source(%arg2 : memref<2048x256xbf16, #tpu.memory_space<any>>) target(%arg6 : memref<2048x256xbf16, #tpu.memory_space<vmem>>) target_semaphore(%1 : memref<!tpu.dma_semaphore, #tpu.memory_space<semaphore_mem>>)
    %c1_i32 = arith.constant 1 : i32
    %2 = tpu.memref_slice %arg9[%c1_i32] : memref<3x!tpu.dma_semaphore, #tpu.memory_space<semaphore_mem>> -> memref<1x!tpu.dma_semaphore, #tpu.memory_space<semaphore_mem>>
    %3 = tpu.memref_squeeze %2 : memref<1x!tpu.dma_semaphore, #tpu.memory_space<semaphore_mem>> -> memref<!tpu.dma_semaphore, #tpu.memory_space<semaphore_mem>>
    tpu.enqueue_dma source(%arg3 : memref<256x512xbf16, #tpu.memory_space<any>>) target(%arg7 : memref<256x512xbf16, #tpu.memory_space<vmem>>) target_semaphore(%3 : memref<!tpu.dma_semaphore, #tpu.memory_space<semaphore_mem>>)
    %c2_i32 = arith.constant 2 : i32
    %4 = tpu.memref_slice %arg9[%c2_i32] : memref<3x!tpu.dma_semaphore, #tpu.memory_space<semaphore_mem>> -> memref<1x!tpu.dma_semaphore, #tpu.memory_space<semaphore_mem>>
    %5 = tpu.memref_squeeze %4 : memref<1x!tpu.dma_semaphore, #tpu.memory_space<semaphore_mem>> -> memref<!tpu.dma_semaphore, #tpu.memory_space<semaphore_mem>>
    tpu.enqueue_dma source(%arg4 : memref<640x128xbf16, #tpu.memory_space<any>>) target(%arg8 : memref<640x128xbf16, #tpu.memory_space<vmem>>) target_semaphore(%5 : memref<!tpu.dma_semaphore, #tpu.memory_space<semaphore_mem>>)
    %c0 = arith.constant 0 : index
    %c0_0 = arith.constant 0 : index
    %6 = vector.load %arg1[%c0, %c0_0] : memref<9x2048xf32, #tpu.memory_space<vmem>>, vector<1x2048xf32>
    %c1 = arith.constant 1 : index
    %c0_1 = arith.constant 0 : index
    %7 = vector.load %arg1[%c1, %c0_1] : memref<9x2048xf32, #tpu.memory_space<vmem>>, vector<1x2048xf32>
    %c2 = arith.constant 2 : index
    %c0_2 = arith.constant 0 : index
    %8 = vector.load %arg1[%c2, %c0_2] : memref<9x2048xf32, #tpu.memory_space<vmem>>, vector<1x256xf32>
    %c3 = arith.constant 3 : index
    %c0_3 = arith.constant 0 : index
    %9 = vector.load %arg1[%c3, %c0_3] : memref<9x2048xf32, #tpu.memory_space<vmem>>, vector<1x256xf32>
    %c4 = arith.constant 4 : index
    %c0_4 = arith.constant 0 : index
    %10 = vector.load %arg1[%c4, %c0_4] : memref<9x2048xf32, #tpu.memory_space<vmem>>, vector<1x512xf32>
    %c5 = arith.constant 5 : index
    %c0_5 = arith.constant 0 : index
    %11 = vector.load %arg1[%c5, %c0_5] : memref<9x2048xf32, #tpu.memory_space<vmem>>, vector<1x512xf32>
    %c6 = arith.constant 6 : index
    %c0_6 = arith.constant 0 : index
    %12 = vector.load %arg1[%c6, %c0_6] : memref<9x2048xf32, #tpu.memory_space<vmem>>, vector<1x128xf32>
    %c7 = arith.constant 7 : index
    %c0_7 = arith.constant 0 : index
    %13 = vector.load %arg1[%c7, %c0_7] : memref<9x2048xf32, #tpu.memory_space<vmem>>, vector<1x128xf32>
    %c8 = arith.constant 8 : index
    %c0_8 = arith.constant 0 : index
    %14 = vector.load %arg1[%c8, %c0_8] : memref<9x2048xf32, #tpu.memory_space<vmem>>, vector<1x128xf32>
    %c0_9 = arith.constant 0 : index
    %c0_10 = arith.constant 0 : index
    %15 = vector.load %arg0[%c0_9, %c0_10] : memref<8x2048xf32, #tpu.memory_space<vmem>>, vector<8x2048xf32>
    %cst = arith.constant dense<0.000000e+00> : vector<2048xf32>
    %16 = vector.multi_reduction <add>, %15, %cst [0] : vector<8x2048xf32> to vector<2048xf32>
    %17 = vector.shape_cast %16 : vector<2048xf32> to vector<1x2048xf32>
    %18 = arith.mulf %15, %15 : vector<8x2048xf32>
    %cst_11 = arith.constant dense<0.000000e+00> : vector<2048xf32>
    %19 = vector.multi_reduction <add>, %18, %cst_11 [0] : vector<8x2048xf32> to vector<2048xf32>
    %20 = vector.shape_cast %19 : vector<2048xf32> to vector<1x2048xf32>
    %cst_12 = arith.constant 1.250000e-01 : f32
    %21 = vector.broadcast %cst_12 : f32 to vector<1x2048xf32>
    %22 = arith.mulf %17, %21 : vector<1x2048xf32>
    %cst_13 = arith.constant 1.250000e-01 : f32
    %23 = vector.broadcast %cst_13 : f32 to vector<1x2048xf32>
    %24 = arith.mulf %20, %23 : vector<1x2048xf32>
    %25 = arith.mulf %22, %22 : vector<1x2048xf32>
    %26 = arith.subf %24, %25 : vector<1x2048xf32>
    %cst_14 = arith.constant 0.000000e+00 : f32
    %27 = vector.broadcast %cst_14 : f32 to vector<1x2048xf32>
    %28 = arith.maximumf %26, %27 : vector<1x2048xf32>
    %cst_15 = arith.constant 9.99999974E-6 : f32
    %29 = vector.broadcast %cst_15 : f32 to vector<1x2048xf32>
    %30 = arith.addf %28, %29 : vector<1x2048xf32>
    %31 = math.rsqrt %30 : vector<1x2048xf32>
    %32 = arith.mulf %6, %31 : vector<1x2048xf32>
    %33 = arith.mulf %22, %32 : vector<1x2048xf32>
    %34 = arith.subf %7, %33 : vector<1x2048xf32>
    %35 = vector.broadcast %32 : vector<1x2048xf32> to vector<8x2048xf32>
    %36 = arith.mulf %15, %35 : vector<8x2048xf32>
    %37 = vector.broadcast %34 : vector<1x2048xf32> to vector<8x2048xf32>
    %38 = arith.addf %36, %37 : vector<8x2048xf32>
    %c0_i32_16 = arith.constant 0 : i32
    %39 = tpu.memref_slice %arg9[%c0_i32_16] : memref<3x!tpu.dma_semaphore, #tpu.memory_space<semaphore_mem>> -> memref<1x!tpu.dma_semaphore, #tpu.memory_space<semaphore_mem>>
    %40 = tpu.memref_squeeze %39 : memref<1x!tpu.dma_semaphore, #tpu.memory_space<semaphore_mem>> -> memref<!tpu.dma_semaphore, #tpu.memory_space<semaphore_mem>>
    tpu.wait_dma2 semaphore(%40 : memref<!tpu.dma_semaphore, #tpu.memory_space<semaphore_mem>>) src(%arg2 : memref<2048x256xbf16, #tpu.memory_space<any>>) dst(%arg6 : memref<2048x256xbf16, #tpu.memory_space<vmem>>)
    %41 = arith.truncf %38 : vector<8x2048xf32> to vector<8x2048xbf16>
    %c0_17 = arith.constant 0 : index
    %c0_18 = arith.constant 0 : index
    %42 = vector.load %arg6[%c0_17, %c0_18] : memref<2048x256xbf16, #tpu.memory_space<vmem>>, vector<2048x256xbf16>
    %cst_19 = arith.constant dense<0.000000e+00> : vector<8x256xf32>
    %43 = tpu.matmul %41, %42, %cst_19 {dimension_numbers = #tpu.dot_dimension_numbers<[1], [0], [0], [1], [0, 0, 1, 1], [], []>} : vector<8x2048xbf16>, vector<2048x256xbf16>, vector<8x256xf32> -> vector<8x256xf32>
    %cst_20 = arith.constant dense<0.000000e+00> : vector<256xf32>
    %44 = vector.multi_reduction <add>, %43, %cst_20 [0] : vector<8x256xf32> to vector<256xf32>
    %45 = vector.shape_cast %44 : vector<256xf32> to vector<1x256xf32>
    %46 = arith.mulf %43, %43 : vector<8x256xf32>
    %cst_21 = arith.constant dense<0.000000e+00> : vector<256xf32>
    %47 = vector.multi_reduction <add>, %46, %cst_21 [0] : vector<8x256xf32> to vector<256xf32>
    %48 = vector.shape_cast %47 : vector<256xf32> to vector<1x256xf32>
    %cst_22 = arith.constant 1.250000e-01 : f32
    %49 = vector.broadcast %cst_22 : f32 to vector<1x256xf32>
    %50 = arith.mulf %45, %49 : vector<1x256xf32>
    %cst_23 = arith.constant 1.250000e-01 : f32
    %51 = vector.broadcast %cst_23 : f32 to vector<1x256xf32>
    %52 = arith.mulf %48, %51 : vector<1x256xf32>
    %53 = arith.mulf %50, %50 : vector<1x256xf32>
    %54 = arith.subf %52, %53 : vector<1x256xf32>
    %cst_24 = arith.constant 0.000000e+00 : f32
    %55 = vector.broadcast %cst_24 : f32 to vector<1x256xf32>
    %56 = arith.maximumf %54, %55 : vector<1x256xf32>
    %cst_25 = arith.constant 9.99999974E-6 : f32
    %57 = vector.broadcast %cst_25 : f32 to vector<1x256xf32>
    %58 = arith.addf %56, %57 : vector<1x256xf32>
    %59 = math.rsqrt %58 : vector<1x256xf32>
    %60 = arith.mulf %8, %59 : vector<1x256xf32>
    %61 = arith.mulf %50, %60 : vector<1x256xf32>
    %62 = arith.subf %9, %61 : vector<1x256xf32>
    %63 = vector.broadcast %60 : vector<1x256xf32> to vector<8x256xf32>
    %64 = arith.mulf %43, %63 : vector<8x256xf32>
    %65 = vector.broadcast %62 : vector<1x256xf32> to vector<8x256xf32>
    %66 = arith.addf %64, %65 : vector<8x256xf32>
    %cst_26 = arith.constant 0.000000e+00 : f32
    %67 = vector.broadcast %cst_26 : f32 to vector<8x256xf32>
    %68 = arith.maximumf %66, %67 : vector<8x256xf32>
    %c1_i32_27 = arith.constant 1 : i32
    %69 = tpu.memref_slice %arg9[%c1_i32_27] : memref<3x!tpu.dma_semaphore, #tpu.memory_space<semaphore_mem>> -> memref<1x!tpu.dma_semaphore, #tpu.memory_space<semaphore_mem>>
    %70 = tpu.memref_squeeze %69 : memref<1x!tpu.dma_semaphore, #tpu.memory_space<semaphore_mem>> -> memref<!tpu.dma_semaphore, #tpu.memory_space<semaphore_mem>>
    tpu.wait_dma2 semaphore(%70 : memref<!tpu.dma_semaphore, #tpu.memory_space<semaphore_mem>>) src(%arg3 : memref<256x512xbf16, #tpu.memory_space<any>>) dst(%arg7 : memref<256x512xbf16, #tpu.memory_space<vmem>>)
    %71 = arith.truncf %68 : vector<8x256xf32> to vector<8x256xbf16>
    %c0_28 = arith.constant 0 : index
    %c0_29 = arith.constant 0 : index
    %72 = vector.load %arg7[%c0_28, %c0_29] : memref<256x512xbf16, #tpu.memory_space<vmem>>, vector<256x512xbf16>
    %cst_30 = arith.constant dense<0.000000e+00> : vector<8x512xf32>
    %73 = tpu.matmul %71, %72, %cst_30 {dimension_numbers = #tpu.dot_dimension_numbers<[1], [0], [0], [1], [0, 0, 1, 1], [], []>} : vector<8x256xbf16>, vector<256x512xbf16>, vector<8x512xf32> -> vector<8x512xf32>
    %cst_31 = arith.constant dense<0.000000e+00> : vector<512xf32>
    %74 = vector.multi_reduction <add>, %73, %cst_31 [0] : vector<8x512xf32> to vector<512xf32>
    %75 = vector.shape_cast %74 : vector<512xf32> to vector<1x512xf32>
    %76 = arith.mulf %73, %73 : vector<8x512xf32>
    %cst_32 = arith.constant dense<0.000000e+00> : vector<512xf32>
    %77 = vector.multi_reduction <add>, %76, %cst_32 [0] : vector<8x512xf32> to vector<512xf32>
    %78 = vector.shape_cast %77 : vector<512xf32> to vector<1x512xf32>
    %cst_33 = arith.constant 1.250000e-01 : f32
    %79 = vector.broadcast %cst_33 : f32 to vector<1x512xf32>
    %80 = arith.mulf %75, %79 : vector<1x512xf32>
    %cst_34 = arith.constant 1.250000e-01 : f32
    %81 = vector.broadcast %cst_34 : f32 to vector<1x512xf32>
    %82 = arith.mulf %78, %81 : vector<1x512xf32>
    %83 = arith.mulf %80, %80 : vector<1x512xf32>
    %84 = arith.subf %82, %83 : vector<1x512xf32>
    %cst_35 = arith.constant 0.000000e+00 : f32
    %85 = vector.broadcast %cst_35 : f32 to vector<1x512xf32>
    %86 = arith.maximumf %84, %85 : vector<1x512xf32>
    %cst_36 = arith.constant 9.99999974E-6 : f32
    %87 = vector.broadcast %cst_36 : f32 to vector<1x512xf32>
    %88 = arith.addf %86, %87 : vector<1x512xf32>
    %89 = math.rsqrt %88 : vector<1x512xf32>
    %90 = arith.mulf %10, %89 : vector<1x512xf32>
    %91 = arith.mulf %80, %90 : vector<1x512xf32>
    %92 = arith.subf %11, %91 : vector<1x512xf32>
    %93 = vector.broadcast %90 : vector<1x512xf32> to vector<8x512xf32>
    %94 = arith.mulf %73, %93 : vector<8x512xf32>
    %95 = vector.broadcast %92 : vector<1x512xf32> to vector<8x512xf32>
    %96 = arith.addf %94, %95 : vector<8x512xf32>
    %cst_37 = arith.constant 0.000000e+00 : f32
    %97 = vector.broadcast %cst_37 : f32 to vector<8x512xf32>
    %98 = arith.maximumf %96, %97 : vector<8x512xf32>
    %c2_i32_38 = arith.constant 2 : i32
    %99 = tpu.memref_slice %arg9[%c2_i32_38] : memref<3x!tpu.dma_semaphore, #tpu.memory_space<semaphore_mem>> -> memref<1x!tpu.dma_semaphore, #tpu.memory_space<semaphore_mem>>
    %100 = tpu.memref_squeeze %99 : memref<1x!tpu.dma_semaphore, #tpu.memory_space<semaphore_mem>> -> memref<!tpu.dma_semaphore, #tpu.memory_space<semaphore_mem>>
    tpu.wait_dma2 semaphore(%100 : memref<!tpu.dma_semaphore, #tpu.memory_space<semaphore_mem>>) src(%arg4 : memref<640x128xbf16, #tpu.memory_space<any>>) dst(%arg8 : memref<640x128xbf16, #tpu.memory_space<vmem>>)
    %101 = arith.truncf %98 : vector<8x512xf32> to vector<8x512xbf16>
    %c0_39 = arith.constant 0 : index
    %c0_40 = arith.constant 0 : index
    %102 = vector.load %arg8[%c0_39, %c0_40] : memref<640x128xbf16, #tpu.memory_space<vmem>>, vector<512x128xbf16>
    %cst_41 = arith.constant dense<0.000000e+00> : vector<8x128xf32>
    %103 = tpu.matmul %101, %102, %cst_41 {dimension_numbers = #tpu.dot_dimension_numbers<[1], [0], [0], [1], [0, 0, 1, 1], [], []>} : vector<8x512xbf16>, vector<512x128xbf16>, vector<8x128xf32> -> vector<8x128xf32>
    %cst_42 = arith.constant dense<0.000000e+00> : vector<128xf32>
    %104 = vector.multi_reduction <add>, %103, %cst_42 [0] : vector<8x128xf32> to vector<128xf32>
    %105 = vector.shape_cast %104 : vector<128xf32> to vector<1x128xf32>
    %106 = arith.mulf %103, %103 : vector<8x128xf32>
    %cst_43 = arith.constant dense<0.000000e+00> : vector<128xf32>
    %107 = vector.multi_reduction <add>, %106, %cst_43 [0] : vector<8x128xf32> to vector<128xf32>
    %108 = vector.shape_cast %107 : vector<128xf32> to vector<1x128xf32>
    %cst_44 = arith.constant 1.250000e-01 : f32
    %109 = vector.broadcast %cst_44 : f32 to vector<1x128xf32>
    %110 = arith.mulf %105, %109 : vector<1x128xf32>
    %cst_45 = arith.constant 1.250000e-01 : f32
    %111 = vector.broadcast %cst_45 : f32 to vector<1x128xf32>
    %112 = arith.mulf %108, %111 : vector<1x128xf32>
    %113 = arith.mulf %110, %110 : vector<1x128xf32>
    %114 = arith.subf %112, %113 : vector<1x128xf32>
    %cst_46 = arith.constant 0.000000e+00 : f32
    %115 = vector.broadcast %cst_46 : f32 to vector<1x128xf32>
    %116 = arith.maximumf %114, %115 : vector<1x128xf32>
    %cst_47 = arith.constant 9.99999974E-6 : f32
    %117 = vector.broadcast %cst_47 : f32 to vector<1x128xf32>
    %118 = arith.addf %116, %117 : vector<1x128xf32>
    %119 = math.rsqrt %118 : vector<1x128xf32>
    %120 = arith.mulf %12, %119 : vector<1x128xf32>
    %121 = arith.mulf %110, %120 : vector<1x128xf32>
    %122 = arith.subf %13, %121 : vector<1x128xf32>
    %123 = vector.broadcast %120 : vector<1x128xf32> to vector<8x128xf32>
    %124 = arith.mulf %103, %123 : vector<8x128xf32>
    %125 = vector.broadcast %122 : vector<1x128xf32> to vector<8x128xf32>
    %126 = arith.addf %124, %125 : vector<8x128xf32>
    %cst_48 = arith.constant 0.000000e+00 : f32
    %127 = vector.broadcast %cst_48 : f32 to vector<8x128xf32>
    %128 = arith.maximumf %126, %127 : vector<8x128xf32>
    %129 = arith.truncf %128 : vector<8x128xf32> to vector<8x128xbf16>
    %c512 = arith.constant 512 : index
    %c0_49 = arith.constant 0 : index
    %130 = vector.load %arg8[%c512, %c0_49] : memref<640x128xbf16, #tpu.memory_space<vmem>>, vector<128x128xbf16>
    %cst_50 = arith.constant dense<0.000000e+00> : vector<8x128xf32>
    %131 = tpu.matmul %129, %130, %cst_50 {dimension_numbers = #tpu.dot_dimension_numbers<[1], [0], [0], [1], [0, 0, 1, 1], [], []>} : vector<8x128xbf16>, vector<128x128xbf16>, vector<8x128xf32> -> vector<8x128xf32>
    %132 = vector.broadcast %14 : vector<1x128xf32> to vector<8x128xf32>
    %133 = arith.addf %131, %132 : vector<8x128xf32>
    %c0_51 = arith.constant 0 : index
    %c0_52 = arith.constant 0 : index
    %134 = vector.load %arg5[%c0_51, %c0_52] : memref<8x128xf32, #tpu.memory_space<vmem>>, vector<8x128xf32>
    tpu.vector_store %arg5[%c0_51, %c0_52], %133 {strides = array<i32>} : memref<8x128xf32, #tpu.memory_space<vmem>>, vector<8x128xf32>,
    return
  }
}

</mosaic_0001>

<llo_original>
// kernel: network_forward.1
$region0: #{network_forward.1}
  #allocation0 [shape = 'u32[]', space=smem, size = 0x4, offset = 0x4, fixed_abs, tag = 'smem constant byte address 0x4 - core index']
  #allocation1 [shape = 'u32[144,128]{1,0:T(1,128)}', space=vmem, size = 0x12000, scoped, tag = 'internal scratch']
  #allocation2 [shape = 'bf16[2048,256]{1,0:T(16,128)(2,1)}', space=vmem, size = 0x100000, scoped, tag = 'scratch operand']
  #allocation3 [shape = 'bf16[256,512]{1,0:T(16,128)(2,1)}', space=vmem, size = 0x40000, scoped, tag = 'scratch operand']
  #allocation4 [shape = 'bf16[640,128]{1,0:T(16,128)(2,1)}', space=vmem, size = 0x28000, scoped, tag = 'scratch operand']
  #allocation5 [shape = 's32[3]{0}', space=sflag, size = 0xc, scoped, tag = 'scratch operand']
  #allocation12 [shape = 's32[]', space=sflag, size = 0x4, offset = 0, fixed_abs, tag = 'sflag constant byte address 0x0 - dummy sync flag']
  #allocation14 [shape = 's32[]', space=sflag, size = 0x4, offset = 0, fixed_abs, tag = 'sflag constant byte address 0x0 - dummy sync flag']
  #allocation16 [shape = 's32[]', space=sflag, size = 0x4, offset = 0, fixed_abs, tag = 'sflag constant byte address 0x0 - dummy sync flag']
  #allocation17 [shape = 's32[]', space=sflag, size = 0x4, offset = 0, fixed_abs, tag = 'sflag constant byte address 0x0 - dummy sync flag']
  #allocation18 [shape = 'u32[]', space=smem, size = 0x4, offset = 0x44, fixed_abs, tag = 'smem constant byte address 0x44 - assertion arg 0']
  #allocation19 [shape = 'u32[]', space=smem, size = 0x4, offset = 0x48, fixed_abs, tag = 'smem constant byte address 0x48 - assertion arg 1']
  %s0 = inlined_call_operand.hbm [shape: f32[8,2048], index: 0, kind: input, shape index: {}]
  %s1 = inlined_call_operand.hbm [shape: f32[9,2048], index: 1, kind: input, shape index: {}]
  %s2 = inlined_call_operand.hbm [shape: bf16[2048,256], index: 2, kind: input, shape index: {}]
  %s3 = inlined_call_operand.hbm [shape: bf16[256,512], index: 3, kind: input, shape index: {}]
  %s4 = inlined_call_operand.hbm [shape: bf16[640,128], index: 4, kind: input, shape index: {}]
  %s5 = inlined_call_operand.hbm [shape: f32[8,128], index: 5, kind: output, shape index: {}]
  %s6 = sld [smem:[#allocation0]]
  $region30: #{network_forward.1} parent=0
    _
  %s8 = ssub.s32 1, %s6
  %s9 = scalar_select 0, %s8, %s6
  $region1: #{network_forward.1} parent=0
    #allocation6 [shape = 'u8[65536]{0}', space=vmem, size = 0x10000, scoped, tag = 'input window, operand 0, single buffered']
    #allocation7 [shape = 's32[1]{0}', space=sflag, size = 0x4, scoped, tag = 'scoped memory for network_forward.1']
    #allocation8 [shape = 's32[1]{0}', space=sflag, size = 0x4, scoped, tag = 'scoped memory for network_forward.1']
    #allocation9 [shape = 'u8[131072]{0}', space=vmem, size = 0x20000, scoped, tag = 'input window, operand 1, single buffered']
    #allocation10 [shape = 's32[1]{0}', space=sflag, size = 0x4, scoped, tag = 'scoped memory for network_forward.1']
    #allocation11 [shape = 'u8[4096]{0}', space=vmem, size = 0x1000, scoped, tag = 'output window, operand 0, single buffered']
    #allocation13 [shape = 'u32[9]{0}', space=smem, size = 0x24, scoped, tag = 'DMA stride descriptor']
    #allocation15 [shape = 'u32[9]{0}', space=smem, size = 0x24, scoped, tag = 'DMA stride descriptor']
    %10 = vsyncpa [#allocation7], 0
    %11 = vsyncpa [#allocation10], 0
    %12 = vsyncpa [#allocation8], 0
    // Predicated region
    $region2: #{network_forward.1} parent=1 // pred_check
      _
    $region3: #{network_forward.1} parent=1 // pred_check_branch
      %14 = sbr.rel (0) target = $region5
    $region4: #{network_forward.1} parent=1 // pred_region
      %s16 = ssub.s32 2048, 2048
      %17 = vsyncadd [#allocation7], %s16
      %s19 = sshll.u32 [#allocation6], 4
      %s20 = int_to_ptr.vmem [resolvable:$true] %s19
      %22 = dma.hbm_to_vmem [thread:$0]  %s0, 2048, %s20, [#allocation7]
    $region5: #{network_forward.1} parent=1 // pred_fallthru
      _
    // Predicated region
    $region6: #{network_forward.1} parent=1 // pred_check
      _
    $region7: #{network_forward.1} parent=1 // pred_check_branch
      %24 = sbr.rel (0) target = $region9
    $region8: #{network_forward.1} parent=1 // pred_region
      %s26 = ssub.s32 4096, 4096
      %27 = vsyncadd [#allocation10], %s26
      %s28 = sshll.u32 [#allocation9], 4
      %s29 = int_to_ptr.vmem [resolvable:$true] %s28
      %34 = dma.hbm_to_vmem [thread:$0]  %s1, 4096, %s29, [#allocation10], 2048, 2048, 128
    $region9: #{network_forward.1} parent=1 // pred_fallthru
      _
    // Predicated region
    $region10: #{network_forward.1} parent=1 // pred_check
      _
    $region11: #{network_forward.1} parent=1 // pred_check_branch
      %36 = sbr.rel (0) target = $region13
    $region12: #{network_forward.1} parent=1 // pred_region
      %37 = dma.done [#allocation7], 2048
    $region13: #{network_forward.1} parent=1 // pred_fallthru
      _
    // Predicated region
    $region14: #{network_forward.1} parent=1 // pred_check
      _
    $region15: #{network_forward.1} parent=1 // pred_check_branch
      %39 = sbr.rel (0) target = $region17
    $region16: #{network_forward.1} parent=1 // pred_region
      %40 = dma.done [#allocation10], 4096
    $region17: #{network_forward.1} parent=1 // pred_fallthru
      _
    %s43 = sshll.u32 1, 14
    %s44 = sxor.u32 4294967295, %s43
    %s46 = sld [smem:[#allocation0]]
    %s47 = sadd.s32 2, %s46
    %s49 = sshll.u32 7, 26
    %s50 = sxor.u32 4294967295, %s49
    %s51 = sand.u32 0, %s50
    %s52 = sshll.u32 %s47, 26
    %s53 = sor.u32 %s51, %s52
    %s54 = sshll.u32 [#allocation2], 4
    %s55 = int_to_ptr.vmem [resolvable:$true] %s54
    %58 = sst [smem:[#allocation13]] 256
    %s59 = scalar_lea.smem [#allocation13], 1
    %60 = sst [smem:[%s59]] 256
    %s61 = scalar_lea.smem [#allocation13], 2
    %62 = sst [smem:[%s61]] 2
    %s63 = scalar_lea.smem [#allocation13], 3
    %64 = sst [smem:[%s63]] 64
    %s65 = scalar_lea.smem [#allocation13], 4
    %66 = sst [smem:[%s65]] 128
    %s67 = scalar_lea.smem [#allocation13], 5
    %68 = sst [smem:[%s67]] 2
    %s69 = scalar_lea.smem [#allocation13], 6
    %70 = sst [smem:[%s69]] 128
    %s71 = scalar_lea.smem [#allocation13], 7
    %72 = sst [smem:[%s71]] 64
    %s73 = scalar_lea.smem [#allocation13], 8
    %74 = sst [smem:[%s73]] 4
    %76 = dma.general %s2, 32768, %s55, [#allocation5], [#allocation12], [#allocation13], %s53, 0
    %s77 = scalar_lea.sflag [#allocation5], 1
    %s79 = sshll.u32 1, 14
    %s80 = sxor.u32 4294967295, %s79
    %s82 = sadd.s32 2, %s46
    %s84 = sshll.u32 7, 26
    %s85 = sxor.u32 4294967295, %s84
    %s86 = sand.u32 0, %s85
    %s87 = sshll.u32 %s82, 26
    %s88 = sor.u32 %s86, %s87
    %s89 = sshll.u32 [#allocation3], 4
    %s90 = int_to_ptr.vmem [resolvable:$true] %s89
    %93 = sst [smem:[#allocation15]] 512
    %s94 = scalar_lea.smem [#allocation15], 1
    %95 = sst [smem:[%s94]] 512
    %s96 = scalar_lea.smem [#allocation15], 2
    %97 = sst [smem:[%s96]] 4
    %s98 = scalar_lea.smem [#allocation15], 3
    %99 = sst [smem:[%s98]] 64
    %s100 = scalar_lea.smem [#allocation15], 4
    %101 = sst [smem:[%s100]] 128
    %s102 = scalar_lea.smem [#allocation15], 5
    %103 = sst [smem:[%s102]] 2
    %s104 = scalar_lea.smem [#allocation15], 6
    %105 = sst [smem:[%s104]] 256
    %s106 = scalar_lea.smem [#allocation15], 7
    %107 = sst [smem:[%s106]] 64
    %s108 = scalar_lea.smem [#allocation15], 8
    %109 = sst [smem:[%s108]] 4
    %111 = dma.general %s3, 8192, %s90, %s77, [#allocation14], [#allocation15], %s88, 0
    %s112 = scalar_lea.sflag [#allocation5], 2
    // Predicated region
    $region18: #{network_forward.1} parent=1 // pred_check
      _
    $region19: #{network_forward.1} parent=1 // pred_check_branch
      %114 = sbr.rel target = $region21
    $region20: #{network_forward.1} parent=1 // pred_region
      %115 = sst [smem:[#allocation18]] [#allocation17]
      %116 = sst [smem:[#allocation19]] [#allocation16]
    $region21: #{network_forward.1} parent=1 // pred_fallthru
      _
    %118 = shalt.err (0)
    %s120 = sshll.u32 [#allocation4], 4
    %s121 = int_to_ptr.vmem [resolvable:$true] %s120
    %123 = dma.hbm_to_vmem [thread:$0]  %s4, 5120, %s121, %s112
    %v124 = vld [vmem:[#allocation9] ss:$8 sm:$0xf]
    %v125 = vld [vmem:[#allocation9] ss:$8 sm:$0xf0]
    %v126 = vor.u32 %v124, %v125
    %s127 = scalar_lea.vmem [#allocation9], 64
    %v128 = vld [vmem:[%s127] ss:$8 sm:$0xf]
    %v129 = vld [vmem:[%s127] ss:$8 sm:$0xf0]
    %v130 = vor.u32 %v128, %v129
    %s131 = scalar_lea.vmem [#allocation9], 1
    %v132 = vld [vmem:[%s131] ss:$8 sm:$0xf]
    %v133 = vld [vmem:[%s131] ss:$8 sm:$0xf0]
    %v134 = vor.u32 %v132, %v133
    %s135 = scalar_lea.vmem [#allocation9], 65
    %v136 = vld [vmem:[%s135] ss:$8 sm:$0xf]
    %v137 = vld [vmem:[%s135] ss:$8 sm:$0xf0]
    %v138 = vor.u32 %v136, %v137
    %s139 = scalar_lea.vmem [#allocation9], 2
    %v140 = vld [vmem:[%s139] ss:$8 sm:$0x3]
    %s141 = scalar_lea.vmem [#allocation9], 3
    %v142 = vld [vmem:[%s141] ss:$8 sm:$0x3]
    %s143 = scalar_lea.vmem [#allocation9], 4
    %v144 = vld [vmem:[%s143] ss:$8 sm:$0xf]
    %s145 = scalar_lea.vmem [#allocation9], 5
    %v146 = vld [vmem:[%s145] ss:$8 sm:$0xf]
    %v147 = vld [vmem:[#allocation9 + $0x6] ss:$0 sm:$0xff]
    %v148 = vld [vmem:[#allocation9 + $0x7] ss:$0 sm:$0xff]
    %v149 = vld [vmem:[#allocation9 + $0x80] ss:$0 sm:$0xff]
    %v150 = vld [vmem:[#allocation6] sm:$0xff]
    %v151 = vld [vmem:[#allocation6 + $0x8] sm:$0xff]
    %v152 = vld [vmem:[#allocation6 + $0x10] sm:$0xff]
    %v153 = vld [vmem:[#allocation6 + $0x18] sm:$0xff]
    %v154 = vld [vmem:[#allocation6 + $0x20] sm:$0xff]
    %v155 = vld [vmem:[#allocation6 + $0x28] sm:$0xff]
    %v156 = vld [vmem:[#allocation6 + $0x30] sm:$0xff]
    %v157 = vld [vmem:[#allocation6 + $0x38] sm:$0xff]
    %v158 = vld [vmem:[#allocation6 + $0x40] sm:$0xff]
    %v159 = vld [vmem:[#allocation6 + $0x48] sm:$0xff]
    %v160 = vld [vmem:[#allocation6 + $0x50] sm:$0xff]
    %v161 = vld [vmem:[#allocation6 + $0x58] sm:$0xff]
    %v162 = vld [vmem:[#allocation6 + $0x60] sm:$0xff]
    %v163 = vld [vmem:[#allocation6 + $0x68] sm:$0xff]
    %v164 = vld [vmem:[#allocation6 + $0x70] sm:$0xff]
    %v165 = vld [vmem:[#allocation6 + $0x78] sm:$0xff]
    %v166 = vrot.slane %v150, 4
    %v167 = vadd.f32 %v150, %v166
    %v168 = vrot.slane %v167, 2
    %v169 = vadd.f32 %v167, %v168
    %v170 = vrot.slane %v169, 1
    %v171 = vadd.f32 %v169, %v170
    %v172 = vrot.slane %v151, 4
    %v173 = vadd.f32 %v151, %v172
    %v174 = vrot.slane %v173, 2
    %v175 = vadd.f32 %v173, %v174
    %v176 = vrot.slane %v175, 1
    %v177 = vadd.f32 %v175, %v176
    %v178 = vrot.slane %v152, 4
    %v179 = vadd.f32 %v152, %v178
    %v180 = vrot.slane %v179, 2
    %v181 = vadd.f32 %v179, %v180
    %v182 = vrot.slane %v181, 1
    %v183 = vadd.f32 %v181, %v182
    %v184 = vrot.slane %v153, 4
    %v185 = vadd.f32 %v153, %v184
    %v186 = vrot.slane %v185, 2
    %v187 = vadd.f32 %v185, %v186
    %v188 = vrot.slane %v187, 1
    %v189 = vadd.f32 %v187, %v188
    %v190 = vrot.slane %v154, 4
    %v191 = vadd.f32 %v154, %v190
    %v192 = vrot.slane %v191, 2
    %v193 = vadd.f32 %v191, %v192
    %v194 = vrot.slane %v193, 1
    %v195 = vadd.f32 %v193, %v194
    %v196 = vrot.slane %v155, 4
    %v197 = vadd.f32 %v155, %v196
    %v198 = vrot.slane %v197, 2
    %v199 = vadd.f32 %v197, %v198
    %v200 = vrot.slane %v199, 1
    %v201 = vadd.f32 %v199, %v200
    %v202 = vrot.slane %v156, 4
    %v203 = vadd.f32 %v156, %v202
    %v204 = vrot.slane %v203, 2
    %v205 = vadd.f32 %v203, %v204
    %v206 = vrot.slane %v205, 1
    %v207 = vadd.f32 %v205, %v206
    %v208 = vrot.slane %v157, 4
    %v209 = vadd.f32 %v157, %v208
    %v210 = vrot.slane %v209, 2
    %v211 = vadd.f32 %v209, %v210
    %v212 = vrot.slane %v211, 1
    %v213 = vadd.f32 %v211, %v212
    %v214 = vrot.slane %v158, 4
    %v215 = vadd.f32 %v158, %v214
    %v216 = vrot.slane %v215, 2
    %v217 = vadd.f32 %v215, %v216
    %v218 = vrot.slane %v217, 1
    %v219 = vadd.f32 %v217, %v218
    %v220 = vrot.slane %v159, 4
    %v221 = vadd.f32 %v159, %v220
    %v222 = vrot.slane %v221, 2
    %v223 = vadd.f32 %v221, %v222
    %v224 = vrot.slane %v223, 1
    %v225 = vadd.f32 %v223, %v224
    %v226 = vrot.slane %v160, 4
    %v227 = vadd.f32 %v160, %v226
    %v228 = vrot.slane %v227, 2
    %v229 = vadd.f32 %v227, %v228
    %v230 = vrot.slane %v229, 1
    %v231 = vadd.f32 %v229, %v230
    %v232 = vrot.slane %v161, 4
    %v233 = vadd.f32 %v161, %v232
    %v234 = vrot.slane %v233, 2
    %v235 = vadd.f32 %v233, %v234
    %v236 = vrot.slane %v235, 1
    %v237 = vadd.f32 %v235, %v236
    %v238 = vrot.slane %v162, 4
    %v239 = vadd.f32 %v162, %v238
    %v240 = vrot.slane %v239, 2
    %v241 = vadd.f32 %v239, %v240
    %v242 = vrot.slane %v241, 1
    %v243 = vadd.f32 %v241, %v242
    %v244 = vrot.slane %v163, 4
    %v245 = vadd.f32 %v163, %v244
    %v246 = vrot.slane %v245, 2
    %v247 = vadd.f32 %v245, %v246
    %v248 = vrot.slane %v247, 1
    %v249 = vadd.f32 %v247, %v248
    %v250 = vrot.slane %v164, 4
    %v251 = vadd.f32 %v164, %v250
    %v252 = vrot.slane %v251, 2
    %v253 = vadd.f32 %v251, %v252
    %v254 = vrot.slane %v253, 1
    %v255 = vadd.f32 %v253, %v254
    %v256 = vrot.slane %v165, 4
    %v257 = vadd.f32 %v165, %v256
    %v258 = vrot.slane %v257, 2
    %v259 = vadd.f32 %v257, %v258
    %v260 = vrot.slane %v259, 1
    %v261 = vadd.f32 %v259, %v260
    %v262 = vmul.f32 %v150, %v150
    %v263 = vmul.f32 %v151, %v151
    %v264 = vmul.f32 %v152, %v152
    %v265 = vmul.f32 %v153, %v153
    %v266 = vmul.f32 %v154, %v154
    %v267 = vmul.f32 %v155, %v155
    %v268 = vmul.f32 %v156, %v156
    %v269 = vmul.f32 %v157, %v157
    %v270 = vmul.f32 %v158, %v158
    %v271 = vmul.f32 %v159, %v159
    %v272 = vmul.f32 %v160, %v160
    %v273 = vmul.f32 %v161, %v161
    %v274 = vmul.f32 %v162, %v162
    %v275 = vmul.f32 %v163, %v163
    %v276 = vmul.f32 %v164, %v164
    %v277 = vmul.f32 %v165, %v165
    %v278 = vrot.slane %v262, 4
    %v279 = vadd.f32 %v262, %v278
    %v280 = vrot.slane %v279, 2
    %v281 = vadd.f32 %v279, %v280
    %v282 = vrot.slane %v281, 1
    %v283 = vadd.f32 %v281, %v282
    %v284 = vrot.slane %v263, 4
    %v285 = vadd.f32 %v263, %v284
    %v286 = vrot.slane %v285, 2
    %v287 = vadd.f32 %v285, %v286
    %v288 = vrot.slane %v287, 1
    %v289 = vadd.f32 %v287, %v288
    %v290 = vrot.slane %v264, 4
    %v291 = vadd.f32 %v264, %v290
    %v292 = vrot.slane %v291, 2
    %v293 = vadd.f32 %v291, %v292
    %v294 = vrot.slane %v293, 1
    %v295 = vadd.f32 %v293, %v294
    %v296 = vrot.slane %v265, 4
    %v297 = vadd.f32 %v265, %v296
    %v298 = vrot.slane %v297, 2
    %v299 = vadd.f32 %v297, %v298
    %v300 = vrot.slane %v299, 1
    %v301 = vadd.f32 %v299, %v300
    %v302 = vrot.slane %v266, 4
    %v303 = vadd.f32 %v266, %v302
    %v304 = vrot.slane %v303, 2
    %v305 = vadd.f32 %v303, %v304
    %v306 = vrot.slane %v305, 1
    %v307 = vadd.f32 %v305, %v306
    %v308 = vrot.slane %v267, 4
    %v309 = vadd.f32 %v267, %v308
    %v310 = vrot.slane %v309, 2
    %v311 = vadd.f32 %v309, %v310
    %v312 = vrot.slane %v311, 1
    %v313 = vadd.f32 %v311, %v312
    %v314 = vrot.slane %v268, 4
    %v315 = vadd.f32 %v268, %v314
    %v316 = vrot.slane %v315, 2
    %v317 = vadd.f32 %v315, %v316
    %v318 = vrot.slane %v317, 1
    %v319 = vadd.f32 %v317, %v318
    %v320 = vrot.slane %v269, 4
    %v321 = vadd.f32 %v269, %v320
    %v322 = vrot.slane %v321, 2
    %v323 = vadd.f32 %v321, %v322
    %v324 = vrot.slane %v323, 1
    %v325 = vadd.f32 %v323, %v324
    %v326 = vrot.slane %v270, 4
    %v327 = vadd.f32 %v270, %v326
    %v328 = vrot.slane %v327, 2
    %v329 = vadd.f32 %v327, %v328
    %v330 = vrot.slane %v329, 1
    %v331 = vadd.f32 %v329, %v330
    %v332 = vrot.slane %v271, 4
    %v333 = vadd.f32 %v271, %v332
    %v334 = vrot.slane %v333, 2
    %v335 = vadd.f32 %v333, %v334
    %v336 = vrot.slane %v335, 1
    %v337 = vadd.f32 %v335, %v336
    %v338 = vrot.slane %v272, 4
    %v339 = vadd.f32 %v272, %v338
    %v340 = vrot.slane %v339, 2
    %v341 = vadd.f32 %v339, %v340
    %v342 = vrot.slane %v341, 1
    %v343 = vadd.f32 %v341, %v342
    %v344 = vrot.slane %v273, 4
    %v345 = vadd.f32 %v273, %v344
    %v346 = vrot.slane %v345, 2
    %v347 = vadd.f32 %v345, %v346
    %v348 = vrot.slane %v347, 1
    %v349 = vadd.f32 %v347, %v348
    %v350 = vrot.slane %v274, 4
    %v351 = vadd.f32 %v274, %v350
    %v352 = vrot.slane %v351, 2
    %v353 = vadd.f32 %v351, %v352
    %v354 = vrot.slane %v353, 1
    %v355 = vadd.f32 %v353, %v354
    %v356 = vrot.slane %v275, 4
    %v357 = vadd.f32 %v275, %v356
    %v358 = vrot.slane %v357, 2
    %v359 = vadd.f32 %v357, %v358
    %v360 = vrot.slane %v359, 1
    %v361 = vadd.f32 %v359, %v360
    %v362 = vrot.slane %v276, 4
    %v363 = vadd.f32 %v276, %v362
    %v364 = vrot.slane %v363, 2
    %v365 = vadd.f32 %v363, %v364
    %v366 = vrot.slane %v365, 1
    %v367 = vadd.f32 %v365, %v366
    %v368 = vrot.slane %v277, 4
    %v369 = vadd.f32 %v277, %v368
    %v370 = vrot.slane %v369, 2
    %v371 = vadd.f32 %v369, %v370
    %v372 = vrot.slane %v371, 1
    %v373 = vadd.f32 %v371, %v372
    %v374 = vmul.f32 %v171, 0.125
    %v375 = vmul.f32 %v177, 0.125
    %v376 = vmul.f32 %v183, 0.125
    %v377 = vmul.f32 %v189, 0.125
    %v378 = vmul.f32 %v195, 0.125
    %v379 = vmul.f32 %v201, 0.125
    %v380 = vmul.f32 %v207, 0.125
    %v381 = vmul.f32 %v213, 0.125
    %v382 = vmul.f32 %v219, 0.125
    %v383 = vmul.f32 %v225, 0.125
    %v384 = vmul.f32 %v231, 0.125
    %v385 = vmul.f32 %v237, 0.125
    %v386 = vmul.f32 %v243, 0.125
    %v387 = vmul.f32 %v249, 0.125
    %v388 = vmul.f32 %v255, 0.125
    %v389 = vmul.f32 %v261, 0.125
    %v390 = vmul.f32 %v283, 0.125
    %v391 = vmul.f32 %v289, 0.125
    %v392 = vmul.f32 %v295, 0.125
    %v393 = vmul.f32 %v301, 0.125
    %v394 = vmul.f32 %v307, 0.125
    %v395 = vmul.f32 %v313, 0.125
    %v396 = vmul.f32 %v319, 0.125
    %v397 = vmul.f32 %v325, 0.125
    %v398 = vmul.f32 %v331, 0.125
    %v399 = vmul.f32 %v337, 0.125
    %v400 = vmul.f32 %v343, 0.125
    %v401 = vmul.f32 %v349, 0.125
    %v402 = vmul.f32 %v355, 0.125
    %v403 = vmul.f32 %v361, 0.125
    %v404 = vmul.f32 %v367, 0.125
    %v405 = vmul.f32 %v373, 0.125
    %v406 = vmul.f32 %v374, %v374
    %v407 = vmul.f32 %v375, %v375
    %v408 = vmul.f32 %v376, %v376
    %v409 = vmul.f32 %v377, %v377
    %v410 = vmul.f32 %v378, %v378
    %v411 = vmul.f32 %v379, %v379
    %v412 = vmul.f32 %v380, %v380
    %v413 = vmul.f32 %v381, %v381
    %v414 = vmul.f32 %v382, %v382
    %v415 = vmul.f32 %v383, %v383
    %v416 = vmul.f32 %v384, %v384
    %v417 = vmul.f32 %v385, %v385
    %v418 = vmul.f32 %v386, %v386
    %v419 = vmul.f32 %v387, %v387
    %v420 = vmul.f32 %v388, %v388
    %v421 = vmul.f32 %v389, %v389
    %v422 = vsub.f32 %v390, %v406
    %v423 = vsub.f32 %v391, %v407
    %v424 = vsub.f32 %v392, %v408
    %v425 = vsub.f32 %v393, %v409
    %v426 = vsub.f32 %v394, %v410
    %v427 = vsub.f32 %v395, %v411
    %v428 = vsub.f32 %v396, %v412
    %v429 = vsub.f32 %v397, %v413
    %v430 = vsub.f32 %v398, %v414
    %v431 = vsub.f32 %v399, %v415
    %v432 = vsub.f32 %v400, %v416
    %v433 = vsub.f32 %v401, %v417
    %v434 = vsub.f32 %v402, %v418
    %v435 = vsub.f32 %v403, %v419
    %v436 = vsub.f32 %v404, %v420
    %v437 = vsub.f32 %v405, %v421
    %v438 = vmax.f32 %v422, 0.0
    %v439 = vmax.f32 %v423, 0.0
    %v440 = vmax.f32 %v424, 0.0
    %v441 = vmax.f32 %v425, 0.0
    %v442 = vmax.f32 %v426, 0.0
    %v443 = vmax.f32 %v427, 0.0
    %v444 = vmax.f32 %v428, 0.0
    %v445 = vmax.f32 %v429, 0.0
    %v446 = vmax.f32 %v430, 0.0
    %v447 = vmax.f32 %v431, 0.0
    %v448 = vmax.f32 %v432, 0.0
    %v449 = vmax.f32 %v433, 0.0
    %v450 = vmax.f32 %v434, 0.0
    %v451 = vmax.f32 %v435, 0.0
    %v452 = vmax.f32 %v436, 0.0
    %v453 = vmax.f32 %v437, 0.0
    %v454 = vadd.f32 %v438, 1e-05
    %v455 = vadd.f32 %v439, 1e-05
    %v456 = vadd.f32 %v440, 1e-05
    %v457 = vadd.f32 %v441, 1e-05
    %v458 = vadd.f32 %v442, 1e-05
    %v459 = vadd.f32 %v443, 1e-05
    %v460 = vadd.f32 %v444, 1e-05
    %v461 = vadd.f32 %v445, 1e-05
    %v462 = vadd.f32 %v446, 1e-05
    %v463 = vadd.f32 %v447, 1e-05
    %v464 = vadd.f32 %v448, 1e-05
    %v465 = vadd.f32 %v449, 1e-05
    %v466 = vadd.f32 %v450, 1e-05
    %v467 = vadd.f32 %v451, 1e-05
    %v468 = vadd.f32 %v452, 1e-05
    %v469 = vadd.f32 %v453, 1e-05
    %v470 = vrsqrt.pop %v454
    %v471 = vrsqrt.pop %v455
    %v472 = vrsqrt.pop %v456
    %v473 = vrsqrt.pop %v457
    %v474 = vrsqrt.pop %v458
    %v475 = vrsqrt.pop %v459
    %v476 = vrsqrt.pop %v460
    %v477 = vrsqrt.pop %v461
    %v478 = vrsqrt.pop %v462
    %v479 = vrsqrt.pop %v463
    %v480 = vrsqrt.pop %v464
    %v481 = vrsqrt.pop %v465
    %v482 = vrsqrt.pop %v466
    %v483 = vrsqrt.pop %v467
    %v484 = vrsqrt.pop %v468
    %v485 = vrsqrt.pop %v469
    %v502 = vcombine.low %v470, %v471
    %v503 = vcombine.low %v472, %v473
    %v504 = vcombine.low %v474, %v475
    %v505 = vcombine.low %v476, %v477
    %v507 = vunpack.c.l.s4 1966171168
    %v508 = vunpack.c.0.s8 %v507
    %v509 = vlaneseq
    %v510 = vshrl.u32 %v509, 7
    %v511 = vsub.s32 %v508, %v510
    %v512 = vrot.slane %v502, %v511
    %v514 = vunpack.c.l.s4 1966171168
    %v515 = vunpack.c.0.s8 %v514
    %v516 = vlaneseq
    %v517 = vshrl.u32 %v516, 7
    %v518 = vsub.s32 %v515, %v517
    %v519 = vrot.slane %v503, %v518
    %v521 = vunpack.c.l.s4 1966171168
    %v522 = vunpack.c.0.s8 %v521
    %v523 = vlaneseq
    %v524 = vshrl.u32 %v523, 7
    %v525 = vsub.s32 %v522, %v524
    %v526 = vrot.slane %v504, %v525
    %v528 = vunpack.c.l.s4 1966171168
    %v529 = vunpack.c.0.s8 %v528
    %v530 = vlaneseq
    %v531 = vshrl.u32 %v530, 7
    %v532 = vsub.s32 %v529, %v531
    %v533 = vrot.slane %v505, %v532
    %v534 = vcombine.low %v512, %v519
    %v535 = vcombine.low %v526, %v533
    %v537 = vunpack.c.l.s4 1966171168
    %v538 = vunpack.c.0.s8 %v537
    %v539 = vlaneseq
    %v540 = vshrl.u32 %v539, 7
    %v541 = vsub.s32 %v538, %v540
    %v542 = vrot.slane %v534, %v541
    %v544 = vunpack.c.l.s4 1966171168
    %v545 = vunpack.c.0.s8 %v544
    %v546 = vlaneseq
    %v547 = vshrl.u32 %v546, 7
    %v548 = vsub.s32 %v545, %v547
    %v549 = vrot.slane %v535, %v548
    %v550 = vcombine.low %v542, %v549
    %v551 = vcombine.low %v478, %v479
    %v552 = vcombine.low %v480, %v481
    %v553 = vcombine.low %v482, %v483
    %v554 = vcombine.low %v484, %v485
    %v556 = vunpack.c.l.s4 1966171168
    %v557 = vunpack.c.0.s8 %v556
    %v558 = vlaneseq
    %v559 = vshrl.u32 %v558, 7
    %v560 = vsub.s32 %v557, %v559
    %v561 = vrot.slane %v551, %v560
    %v563 = vunpack.c.l.s4 1966171168
    %v564 = vunpack.c.0.s8 %v563
    %v565 = vlaneseq
    %v566 = vshrl.u32 %v565, 7
    %v567 = vsub.s32 %v564, %v566
    %v568 = vrot.slane %v552, %v567
    %v570 = vunpack.c.l.s4 1966171168
    %v571 = vunpack.c.0.s8 %v570
    %v572 = vlaneseq
    %v573 = vshrl.u32 %v572, 7
    %v574 = vsub.s32 %v571, %v573
    %v575 = vrot.slane %v553, %v574
    %v577 = vunpack.c.l.s4 1966171168
    %v578 = vunpack.c.0.s8 %v577
    %v579 = vlaneseq
    %v580 = vshrl.u32 %v579, 7
    %v581 = vsub.s32 %v578, %v580
    %v582 = vrot.slane %v554, %v581
    %v583 = vcombine.low %v561, %v568
    %v584 = vcombine.low %v575, %v582
    %v586 = vunpack.c.l.s4 1966171168
    %v587 = vunpack.c.0.s8 %v586
    %v588 = vlaneseq
    %v589 = vshrl.u32 %v588, 7
    %v590 = vsub.s32 %v587, %v589
    %v591 = vrot.slane %v583, %v590
    %v593 = vunpack.c.l.s4 1966171168
    %v594 = vunpack.c.0.s8 %v593
    %v595 = vlaneseq
    %v596 = vshrl.u32 %v595, 7
    %v597 = vsub.s32 %v594, %v596
    %v598 = vrot.slane %v584, %v597
    %v599 = vcombine.low %v591, %v598
    %v602 = vmul.f32 %v126, %v550
    %v603 = vmul.f32 %v130, %v599
    %v606 = vlaneseq
    %v607 = vshrl.u32 %v606, 7
    %v608 = vsub.s32 0, %v607
    %v609 = vrot.slane %v602, %v608
    %v610 = vlaneseq
    %v611 = vshrl.u32 %v610, 7
    %v612 = vsub.s32 1, %v611
    %v613 = vrot.slane %v602, %v612
    %v614 = vlaneseq
    %v615 = vshrl.u32 %v614, 7
    %v616 = vsub.s32 2, %v615
    %v617 = vrot.slane %v602, %v616
    %v618 = vlaneseq
    %v619 = vshrl.u32 %v618, 7
    %v620 = vsub.s32 3, %v619
    %v621 = vrot.slane %v602, %v620
    %v622 = vlaneseq
    %v623 = vshrl.u32 %v622, 7
    %v624 = vsub.s32 4, %v623
    %v625 = vrot.slane %v602, %v624
    %v626 = vlaneseq
    %v627 = vshrl.u32 %v626, 7
    %v628 = vsub.s32 5, %v627
    %v629 = vrot.slane %v602, %v628
    %v630 = vlaneseq
    %v631 = vshrl.u32 %v630, 7
    %v632 = vsub.s32 6, %v631
    %v633 = vrot.slane %v602, %v632
    %v634 = vlaneseq
    %v635 = vshrl.u32 %v634, 7
    %v636 = vsub.s32 7, %v635
    %v637 = vrot.slane %v602, %v636
    %v638 = vlaneseq
    %v639 = vshrl.u32 %v638, 7
    %v640 = vsub.s32 0, %v639
    %v641 = vrot.slane %v603, %v640
    %v642 = vlaneseq
    %v643 = vshrl.u32 %v642, 7
    %v644 = vsub.s32 1, %v643
    %v645 = vrot.slane %v603, %v644
    %v646 = vlaneseq
    %v647 = vshrl.u32 %v646, 7
    %v648 = vsub.s32 2, %v647
    %v649 = vrot.slane %v603, %v648
    %v650 = vlaneseq
    %v651 = vshrl.u32 %v650, 7
    %v652 = vsub.s32 3, %v651
    %v653 = vrot.slane %v603, %v652
    %v654 = vlaneseq
    %v655 = vshrl.u32 %v654, 7
    %v656 = vsub.s32 4, %v655
    %v657 = vrot.slane %v603, %v656
    %v658 = vlaneseq
    %v659 = vshrl.u32 %v658, 7
    %v660 = vsub.s32 5, %v659
    %v661 = vrot.slane %v603, %v660
    %v662 = vlaneseq
    %v663 = vshrl.u32 %v662, 7
    %v664 = vsub.s32 6, %v663
    %v665 = vrot.slane %v603, %v664
    %v666 = vlaneseq
    %v667 = vshrl.u32 %v666, 7
    %v668 = vsub.s32 7, %v667
    %v669 = vrot.slane %v603, %v668
    %v686 = vmul.f32 %v374, %v609
    %v687 = vmul.f32 %v375, %v613
    %v688 = vmul.f32 %v376, %v617
    %v689 = vmul.f32 %v377, %v621
    %v690 = vmul.f32 %v378, %v625
    %v691 = vmul.f32 %v379, %v629
    %v692 = vmul.f32 %v380, %v633
    %v693 = vmul.f32 %v381, %v637
    %v694 = vmul.f32 %v382, %v641
    %v695 = vmul.f32 %v383, %v645
    %v696 = vmul.f32 %v384, %v649
    %v697 = vmul.f32 %v385, %v653
    %v698 = vmul.f32 %v386, %v657
    %v699 = vmul.f32 %v387, %v661
    %v700 = vmul.f32 %v388, %v665
    %v701 = vmul.f32 %v389, %v669
    %v718 = vcombine.low %v686, %v687
    %v719 = vcombine.low %v688, %v689
    %v720 = vcombine.low %v690, %v691
    %v721 = vcombine.low %v692, %v693
    %v723 = vunpack.c.l.s4 1966171168
    %v724 = vunpack.c.0.s8 %v723
    %v725 = vlaneseq
    %v726 = vshrl.u32 %v725, 7
    %v727 = vsub.s32 %v724, %v726
    %v728 = vrot.slane %v718, %v727
    %v730 = vunpack.c.l.s4 1966171168
    %v731 = vunpack.c.0.s8 %v730
    %v732 = vlaneseq
    %v733 = vshrl.u32 %v732, 7
    %v734 = vsub.s32 %v731, %v733
    %v735 = vrot.slane %v719, %v734
    %v737 = vunpack.c.l.s4 1966171168
    %v738 = vunpack.c.0.s8 %v737
    %v739 = vlaneseq
    %v740 = vshrl.u32 %v739, 7
    %v741 = vsub.s32 %v738, %v740
    %v742 = vrot.slane %v720, %v741
    %v744 = vunpack.c.l.s4 1966171168
    %v745 = vunpack.c.0.s8 %v744
    %v746 = vlaneseq
    %v747 = vshrl.u32 %v746, 7
    %v748 = vsub.s32 %v745, %v747
    %v749 = vrot.slane %v721, %v748
    %v750 = vcombine.low %v728, %v735
    %v751 = vcombine.low %v742, %v749
    %v753 = vunpack.c.l.s4 1966171168
    %v754 = vunpack.c.0.s8 %v753
    %v755 = vlaneseq
    %v756 = vshrl.u32 %v755, 7
    %v757 = vsub.s32 %v754, %v756
    %v758 = vrot.slane %v750, %v757
    %v760 = vunpack.c.l.s4 1966171168
    %v761 = vunpack.c.0.s8 %v760
    %v762 = vlaneseq
    %v763 = vshrl.u32 %v762, 7
    %v764 = vsub.s32 %v761, %v763
    %v765 = vrot.slane %v751, %v764
    %v766 = vcombine.low %v758, %v765
    %v767 = vcombine.low %v694, %v695
    %v768 = vcombine.low %v696, %v697
    %v769 = vcombine.low %v698, %v699
    %v770 = vcombine.low %v700, %v701
    %v772 = vunpack.c.l.s4 1966171168
    %v773 = vunpack.c.0.s8 %v772
    %v774 = vlaneseq
    %v775 = vshrl.u32 %v774, 7
    %v776 = vsub.s32 %v773, %v775
    %v777 = vrot.slane %v767, %v776
    %v779 = vunpack.c.l.s4 1966171168
    %v780 = vunpack.c.0.s8 %v779
    %v781 = vlaneseq
    %v782 = vshrl.u32 %v781, 7
    %v783 = vsub.s32 %v780, %v782
    %v784 = vrot.slane %v768, %v783
    %v786 = vunpack.c.l.s4 1966171168
    %v787 = vunpack.c.0.s8 %v786
    %v788 = vlaneseq
    %v789 = vshrl.u32 %v788, 7
    %v790 = vsub.s32 %v787, %v789
    %v791 = vrot.slane %v769, %v790
    %v793 = vunpack.c.l.s4 1966171168
    %v794 = vunpack.c.0.s8 %v793
    %v795 = vlaneseq
    %v796 = vshrl.u32 %v795, 7
    %v797 = vsub.s32 %v794, %v796
    %v798 = vrot.slane %v770, %v797
    %v799 = vcombine.low %v777, %v784
    %v800 = vcombine.low %v791, %v798
    %v802 = vunpack.c.l.s4 1966171168
    %v803 = vunpack.c.0.s8 %v802
    %v804 = vlaneseq
    %v805 = vshrl.u32 %v804, 7
    %v806 = vsub.s32 %v803, %v805
    %v807 = vrot.slane %v799, %v806
    %v809 = vunpack.c.l.s4 1966171168
    %v810 = vunpack.c.0.s8 %v809
    %v811 = vlaneseq
    %v812 = vshrl.u32 %v811, 7
    %v813 = vsub.s32 %v810, %v812
    %v814 = vrot.slane %v800, %v813
    %v815 = vcombine.low %v807, %v814
    %v818 = vsub.f32 %v134, %v766
    %v819 = vsub.f32 %v138, %v815
    %v820 = vmul.f32 %v150, %v609
    %v821 = vmul.f32 %v151, %v613
    %v822 = vmul.f32 %v152, %v617
    %v823 = vmul.f32 %v153, %v621
    %v824 = vmul.f32 %v154, %v625
    %v825 = vmul.f32 %v155, %v629
    %v826 = vmul.f32 %v156, %v633
    %v827 = vmul.f32 %v157, %v637
    %v828 = vmul.f32 %v158, %v641
    %v829 = vmul.f32 %v159, %v645
    %v830 = vmul.f32 %v160, %v649
    %v831 = vmul.f32 %v161, %v653
    %v832 = vmul.f32 %v162, %v657
    %v833 = vmul.f32 %v163, %v661
    %v834 = vmul.f32 %v164, %v665
    %v835 = vmul.f32 %v165, %v669
    %v838 = vlaneseq
    %v839 = vshrl.u32 %v838, 7
    %v840 = vsub.s32 0, %v839
    %v841 = vrot.slane %v818, %v840
    %v842 = vlaneseq
    %v843 = vshrl.u32 %v842, 7
    %v844 = vsub.s32 1, %v843
    %v845 = vrot.slane %v818, %v844
    %v846 = vlaneseq
    %v847 = vshrl.u32 %v846, 7
    %v848 = vsub.s32 2, %v847
    %v849 = vrot.slane %v818, %v848
    %v850 = vlaneseq
    %v851 = vshrl.u32 %v850, 7
    %v852 = vsub.s32 3, %v851
    %v853 = vrot.slane %v818, %v852
    %v854 = vlaneseq
    %v855 = vshrl.u32 %v854, 7
    %v856 = vsub.s32 4, %v855
    %v857 = vrot.slane %v818, %v856
    %v858 = vlaneseq
    %v859 = vshrl.u32 %v858, 7
    %v860 = vsub.s32 5, %v859
    %v861 = vrot.slane %v818, %v860
    %v862 = vlaneseq
    %v863 = vshrl.u32 %v862, 7
    %v864 = vsub.s32 6, %v863
    %v865 = vrot.slane %v818, %v864
    %v866 = vlaneseq
    %v867 = vshrl.u32 %v866, 7
    %v868 = vsub.s32 7, %v867
    %v869 = vrot.slane %v818, %v868
    %v870 = vlaneseq
    %v871 = vshrl.u32 %v870, 7
    %v872 = vsub.s32 0, %v871
    %v873 = vrot.slane %v819, %v872
    %v874 = vlaneseq
    %v875 = vshrl.u32 %v874, 7
    %v876 = vsub.s32 1, %v875
    %v877 = vrot.slane %v819, %v876
    %v878 = vlaneseq
    %v879 = vshrl.u32 %v878, 7
    %v880 = vsub.s32 2, %v879
    %v881 = vrot.slane %v819, %v880
    %v882 = vlaneseq
    %v883 = vshrl.u32 %v882, 7
    %v884 = vsub.s32 3, %v883
    %v885 = vrot.slane %v819, %v884
    %v886 = vlaneseq
    %v887 = vshrl.u32 %v886, 7
    %v888 = vsub.s32 4, %v887
    %v889 = vrot.slane %v819, %v888
    %v890 = vlaneseq
    %v891 = vshrl.u32 %v890, 7
    %v892 = vsub.s32 5, %v891
    %v893 = vrot.slane %v819, %v892
    %v894 = vlaneseq
    %v895 = vshrl.u32 %v894, 7
    %v896 = vsub.s32 6, %v895
    %v897 = vrot.slane %v819, %v896
    %v898 = vlaneseq
    %v899 = vshrl.u32 %v898, 7
    %v900 = vsub.s32 7, %v899
    %v901 = vrot.slane %v819, %v900
    %v918 = vadd.f32 %v820, %v841
    %v919 = vadd.f32 %v821, %v845
    %v920 = vadd.f32 %v822, %v849
    %v921 = vadd.f32 %v823, %v853
    %v922 = vadd.f32 %v824, %v857
    %v923 = vadd.f32 %v825, %v861
    %v924 = vadd.f32 %v826, %v865
    %v925 = vadd.f32 %v827, %v869
    %v926 = vadd.f32 %v828, %v873
    %v927 = vadd.f32 %v829, %v877
    %v928 = vadd.f32 %v830, %v881
    %v929 = vadd.f32 %v831, %v885
    %v930 = vadd.f32 %v832, %v889
    %v931 = vadd.f32 %v833, %v893
    %v932 = vadd.f32 %v834, %v897
    %v933 = vadd.f32 %v835, %v901
    %s934 = smul.u32 4, 256
    %s935 = smul.u32 %s934, 2
    %s936 = sshll.u32 %s935, 4
    %937 = dma.done [#allocation5], %s936
    %v938 = vpack.c.bf16 %v918, %v918
    %v939 = vpack.c.bf16 %v919, %v919
    %v940 = vpack.c.bf16 %v920, %v920
    %v941 = vpack.c.bf16 %v921, %v921
    %v942 = vpack.c.bf16 %v922, %v922
    %v943 = vpack.c.bf16 %v923, %v923
    %v944 = vpack.c.bf16 %v924, %v924
    %v945 = vpack.c.bf16 %v925, %v925
    %v946 = vpack.c.bf16 %v926, %v926
    %v947 = vpack.c.bf16 %v927, %v927
    %v948 = vpack.c.bf16 %v928, %v928
    %v949 = vpack.c.bf16 %v929, %v929
    %v950 = vpack.c.bf16 %v930, %v930
    %v951 = vpack.c.bf16 %v931, %v931
    %v952 = vpack.c.bf16 %v932, %v932
    %v953 = vpack.c.bf16 %v933, %v933
    %v954 = vld [vmem:[#allocation2] sm:$0xff]
    %v955 = vld [vmem:[#allocation2 + $0x8] sm:$0xff]
    %v956 = vld [vmem:[#allocation2 + $0x10] sm:$0xff]
    %v957 = vld [vmem:[#allocation2 + $0x18] sm:$0xff]
    %v958 = vld [vmem:[#allocation2 + $0x20] sm:$0xff]
    %v959 = vld [vmem:[#allocation2 + $0x28] sm:$0xff]
    %v960 = vld [vmem:[#allocation2 + $0x30] sm:$0xff]
    %v961 = vld [vmem:[#allocation2 + $0x38] sm:$0xff]
    %v962 = vld [vmem:[#allocation2 + $0x40] sm:$0xff]
    %v963 = vld [vmem:[#allocation2 + $0x48] sm:$0xff]
    %v964 = vld [vmem:[#allocation2 + $0x50] sm:$0xff]
    %v965 = vld [vmem:[#allocation2 + $0x58] sm:$0xff]
    %v966 = vld [vmem:[#allocation2 + $0x60] sm:$0xff]
    %v967 = vld [vmem:[#allocation2 + $0x68] sm:$0xff]
    %v968 = vld [vmem:[#allocation2 + $0x70] sm:$0xff]
    %v969 = vld [vmem:[#allocation2 + $0x78] sm:$0xff]
    %v970 = vld [vmem:[#allocation2 + $0x80] sm:$0xff]
    %v971 = vld [vmem:[#allocation2 + $0x88] sm:$0xff]
    %v972 = vld [vmem:[#allocation2 + $0x90] sm:$0xff]
    %v973 = vld [vmem:[#allocation2 + $0x98] sm:$0xff]
    %v974 = vld [vmem:[#allocation2 + $0xa0] sm:$0xff]
    %v975 = vld [vmem:[#allocation2 + $0xa8] sm:$0xff]
    %v976 = vld [vmem:[#allocation2 + $0xb0] sm:$0xff]
    %v977 = vld [vmem:[#allocation2 + $0xb8] sm:$0xff]
    %v978 = vld [vmem:[#allocation2 + $0xc0] sm:$0xff]
    %v979 = vld [vmem:[#allocation2 + $0xc8] sm:$0xff]
    %v980 = vld [vmem:[#allocation2 + $0xd0] sm:$0xff]
    %v981 = vld [vmem:[#allocation2 + $0xd8] sm:$0xff]
    %v982 = vld [vmem:[#allocation2 + $0xe0] sm:$0xff]
    %v983 = vld [vmem:[#allocation2 + $0xe8] sm:$0xff]
    %v984 = vld [vmem:[#allocation2 + $0xf0] sm:$0xff]
    %v985 = vld [vmem:[#allocation2 + $0xf8] sm:$0xff]
    %v986 = vld [vmem:[#allocation2 + $0x100] sm:$0xff]
    %v987 = vld [vmem:[#allocation2 + $0x108] sm:$0xff]
    %v988 = vld [vmem:[#allocation2 + $0x110] sm:$0xff]
    %v989 = vld [vmem:[#allocation2 + $0x118] sm:$0xff]
    %v990 = vld [vmem:[#allocation2 + $0x120] sm:$0xff]
    %v991 = vld [vmem:[#allocation2 + $0x128] sm:$0xff]
    %v992 = vld [vmem:[#allocation2 + $0x130] sm:$0xff]
    %v993 = vld [vmem:[#allocation2 + $0x138] sm:$0xff]
    %v994 = vld [vmem:[#allocation2 + $0x140] sm:$0xff]
    %v995 = vld [vmem:[#allocation2 + $0x148] sm:$0xff]
    %v996 = vld [vmem:[#allocation2 + $0x150] sm:$0xff]
    %v997 = vld [vmem:[#allocation2 + $0x158] sm:$0xff]
    %v998 = vld [vmem:[#allocation2 + $0x160] sm:$0xff]
    %v999 = vld [vmem:[#allocation2 + $0x168] sm:$0xff]
    %v1000 = vld [vmem:[#allocation2 + $0x170] sm:$0xff]
    %v1001 = vld [vmem:[#allocation2 + $0x178] sm:$0xff]
    %v1002 = vld [vmem:[#allocation2 + $0x180] sm:$0xff]
    %v1003 = vld [vmem:[#allocation2 + $0x188] sm:$0xff]
    %v1004 = vld [vmem:[#allocation2 + $0x190] sm:$0xff]
    %v1005 = vld [vmem:[#allocation2 + $0x198] sm:$0xff]
    %v1006 = vld [vmem:[#allocation2 + $0x1a0] sm:$0xff]
    %v1007 = vld [vmem:[#allocation2 + $0x1a8] sm:$0xff]
    %v1008 = vld [vmem:[#allocation2 + $0x1b0] sm:$0xff]
    %v1009 = vld [vmem:[#allocation2 + $0x1b8] sm:$0xff]
    %v1010 = vld [vmem:[#allocation2 + $0x1c0] sm:$0xff]
    %v1011 = vld [vmem:[#allocation2 + $0x1c8] sm:$0xff]
    %v1012 = vld [vmem:[#allocation2 + $0x1d0] sm:$0xff]
    %v1013 = vld [vmem:[#allocation2 + $0x1d8] sm:$0xff]
    %v1014 = vld [vmem:[#allocation2 + $0x1e0] sm:$0xff]
    %v1015 = vld [vmem:[#allocation2 + $0x1e8] sm:$0xff]
    %v1016 = vld [vmem:[#allocation2 + $0x1f0] sm:$0xff]
    %v1017 = vld [vmem:[#allocation2 + $0x1f8] sm:$0xff]
    %v1018 = vld [vmem:[#allocation2 + $0x200] sm:$0xff]
    %v1019 = vld [vmem:[#allocation2 + $0x208] sm:$0xff]
    %v1020 = vld [vmem:[#allocation2 + $0x210] sm:$0xff]
    %v1021 = vld [vmem:[#allocation2 + $0x218] sm:$0xff]
    %v1022 = vld [vmem:[#allocation2 + $0x220] sm:$0xff]
    %v1023 = vld [vmem:[#allocation2 + $0x228] sm:$0xff]
    %v1024 = vld [vmem:[#allocation2 + $0x230] sm:$0xff]
    %v1025 = vld [vmem:[#allocation2 + $0x238] sm:$0xff]
    %v1026 = vld [vmem:[#allocation2 + $0x240] sm:$0xff]
    %v1027 = vld [vmem:[#allocation2 + $0x248] sm:$0xff]
    %v1028 = vld [vmem:[#allocation2 + $0x250] sm:$0xff]
    %v1029 = vld [vmem:[#allocation2 + $0x258] sm:$0xff]
    %v1030 = vld [vmem:[#allocation2 + $0x260] sm:$0xff]
    %v1031 = vld [vmem:[#allocation2 + $0x268] sm:$0xff]
    %v1032 = vld [vmem:[#allocation2 + $0x270] sm:$0xff]
    %v1033 = vld [vmem:[#allocation2 + $0x278] sm:$0xff]
    %v1034 = vld [vmem:[#allocation2 + $0x280] sm:$0xff]
    %v1035 = vld [vmem:[#allocation2 + $0x288] sm:$0xff]
    %v1036 = vld [vmem:[#allocation2 + $0x290] sm:$0xff]
    %v1037 = vld [vmem:[#allocation2 + $0x298] sm:$0xff]
    %v1038 = vld [vmem:[#allocation2 + $0x2a0] sm:$0xff]
    %v1039 = vld [vmem:[#allocation2 + $0x2a8] sm:$0xff]
    %v1040 = vld [vmem:[#allocation2 + $0x2b0] sm:$0xff]
    %v1041 = vld [vmem:[#allocation2 + $0x2b8] sm:$0xff]
    %v1042 = vld [vmem:[#allocation2 + $0x2c0] sm:$0xff]
    %v1043 = vld [vmem:[#allocation2 + $0x2c8] sm:$0xff]
    %v1044 = vld [vmem:[#allocation2 + $0x2d0] sm:$0xff]
    %v1045 = vld [vmem:[#allocation2 + $0x2d8] sm:$0xff]
    %v1046 = vld [vmem:[#allocation2 + $0x2e0] sm:$0xff]
    %v1047 = vld [vmem:[#allocation2 + $0x2e8] sm:$0xff]
    %v1048 = vld [vmem:[#allocation2 + $0x2f0] sm:$0xff]
    %v1049 = vld [vmem:[#allocation2 + $0x2f8] sm:$0xff]
    %v1050 = vld [vmem:[#allocation2 + $0x300] sm:$0xff]
    %v1051 = vld [vmem:[#allocation2 + $0x308] sm:$0xff]
    %v1052 = vld [vmem:[#allocation2 + $0x310] sm:$0xff]
    %v1053 = vld [vmem:[#allocation2 + $0x318] sm:$0xff]
    %v1054 = vld [vmem:[#allocation2 + $0x320] sm:$0xff]
    %v1055 = vld [vmem:[#allocation2 + $0x328] sm:$0xff]
    %v1056 = vld [vmem:[#allocation2 + $0x330] sm:$0xff]
    %v1057 = vld [vmem:[#allocation2 + $0x338] sm:$0xff]
    %v1058 = vld [vmem:[#allocation2 + $0x340] sm:$0xff]
    %v1059 = vld [vmem:[#allocation2 + $0x348] sm:$0xff]
    %v1060 = vld [vmem:[#allocation2 + $0x350] sm:$0xff]
    %v1061 = vld [vmem:[#allocation2 + $0x358] sm:$0xff]
    %v1062 = vld [vmem:[#allocation2 + $0x360] sm:$0xff]
    %v1063 = vld [vmem:[#allocation2 + $0x368] sm:$0xff]
    %v1064 = vld [vmem:[#allocation2 + $0x370] sm:$0xff]
    %v1065 = vld [vmem:[#allocation2 + $0x378] sm:$0xff]
    %v1066 = vld [vmem:[#allocation2 + $0x380] sm:$0xff]
    %v1067 = vld [vmem:[#allocation2 + $0x388] sm:$0xff]
    %v1068 = vld [vmem:[#allocation2 + $0x390] sm:$0xff]
    %v1069 = vld [vmem:[#allocation2 + $0x398] sm:$0xff]
    %v1070 = vld [vmem:[#allocation2 + $0x3a0] sm:$0xff]
    %v1071 = vld [vmem:[#allocation2 + $0x3a8] sm:$0xff]
    %v1072 = vld [vmem:[#allocation2 + $0x3b0] sm:$0xff]
    %v1073 = vld [vmem:[#allocation2 + $0x3b8] sm:$0xff]
    %v1074 = vld [vmem:[#allocation2 + $0x3c0] sm:$0xff]
    %v1075 = vld [vmem:[#allocation2 + $0x3c8] sm:$0xff]
    %v1076 = vld [vmem:[#allocation2 + $0x3d0] sm:$0xff]
    %v1077 = vld [vmem:[#allocation2 + $0x3d8] sm:$0xff]
    %v1078 = vld [vmem:[#allocation2 + $0x3e0] sm:$0xff]
    %v1079 = vld [vmem:[#allocation2 + $0x3e8] sm:$0xff]
    %v1080 = vld [vmem:[#allocation2 + $0x3f0] sm:$0xff]
    %v1081 = vld [vmem:[#allocation2 + $0x3f8] sm:$0xff]
    %v1082 = vld [vmem:[#allocation2 + $0x400] sm:$0xff]
    %v1083 = vld [vmem:[#allocation2 + $0x408] sm:$0xff]
    %v1084 = vld [vmem:[#allocation2 + $0x410] sm:$0xff]
    %v1085 = vld [vmem:[#allocation2 + $0x418] sm:$0xff]
    %v1086 = vld [vmem:[#allocation2 + $0x420] sm:$0xff]
    %v1087 = vld [vmem:[#allocation2 + $0x428] sm:$0xff]
    %v1088 = vld [vmem:[#allocation2 + $0x430] sm:$0xff]
    %v1089 = vld [vmem:[#allocation2 + $0x438] sm:$0xff]
    %v1090 = vld [vmem:[#allocation2 + $0x440] sm:$0xff]
    %v1091 = vld [vmem:[#allocation2 + $0x448] sm:$0xff]
    %v1092 = vld [vmem:[#allocation2 + $0x450] sm:$0xff]
    %v1093 = vld [vmem:[#allocation2 + $0x458] sm:$0xff]
    %v1094 = vld [vmem:[#allocation2 + $0x460] sm:$0xff]
    %v1095 = vld [vmem:[#allocation2 + $0x468] sm:$0xff]
    %v1096 = vld [vmem:[#allocation2 + $0x470] sm:$0xff]
    %v1097 = vld [vmem:[#allocation2 + $0x478] sm:$0xff]
    %v1098 = vld [vmem:[#allocation2 + $0x480] sm:$0xff]
    %v1099 = vld [vmem:[#allocation2 + $0x488] sm:$0xff]
    %v1100 = vld [vmem:[#allocation2 + $0x490] sm:$0xff]
    %v1101 = vld [vmem:[#allocation2 + $0x498] sm:$0xff]
    %v1102 = vld [vmem:[#allocation2 + $0x4a0] sm:$0xff]
    %v1103 = vld [vmem:[#allocation2 + $0x4a8] sm:$0xff]
    %v1104 = vld [vmem:[#allocation2 + $0x4b0] sm:$0xff]
    %v1105 = vld [vmem:[#allocation2 + $0x4b8] sm:$0xff]
    %v1106 = vld [vmem:[#allocation2 + $0x4c0] sm:$0xff]
    %v1107 = vld [vmem:[#allocation2 + $0x4c8] sm:$0xff]
    %v1108 = vld [vmem:[#allocation2 + $0x4d0] sm:$0xff]
    %v1109 = vld [vmem:[#allocation2 + $0x4d8] sm:$0xff]
    %v1110 = vld [vmem:[#allocation2 + $0x4e0] sm:$0xff]
    %v1111 = vld [vmem:[#allocation2 + $0x4e8] sm:$0xff]
    %v1112 = vld [vmem:[#allocation2 + $0x4f0] sm:$0xff]
    %v1113 = vld [vmem:[#allocation2 + $0x4f8] sm:$0xff]
    %v1114 = vld [vmem:[#allocation2 + $0x500] sm:$0xff]
    %v1115 = vld [vmem:[#allocation2 + $0x508] sm:$0xff]
    %v1116 = vld [vmem:[#allocation2 + $0x510] sm:$0xff]
    %v1117 = vld [vmem:[#allocation2 + $0x518] sm:$0xff]
    %v1118 = vld [vmem:[#allocation2 + $0x520] sm:$0xff]
    %v1119 = vld [vmem:[#allocation2 + $0x528] sm:$0xff]
    %v1120 = vld [vmem:[#allocation2 + $0x530] sm:$0xff]
    %v1121 = vld [vmem:[#allocation2 + $0x538] sm:$0xff]
    %v1122 = vld [vmem:[#allocation2 + $0x540] sm:$0xff]
    %v1123 = vld [vmem:[#allocation2 + $0x548] sm:$0xff]
    %v1124 = vld [vmem:[#allocation2 + $0x550] sm:$0xff]
    %v1125 = vld [vmem:[#allocation2 + $0x558] sm:$0xff]
    %v1126 = vld [vmem:[#allocation2 + $0x560] sm:$0xff]
    %v1127 = vld [vmem:[#allocation2 + $0x568] sm:$0xff]
    %v1128 = vld [vmem:[#allocation2 + $0x570] sm:$0xff]
    %v1129 = vld [vmem:[#allocation2 + $0x578] sm:$0xff]
    %v1130 = vld [vmem:[#allocation2 + $0x580] sm:$0xff]
    %v1131 = vld [vmem:[#allocation2 + $0x588] sm:$0xff]
    %v1132 = vld [vmem:[#allocation2 + $0x590] sm:$0xff]
    %v1133 = vld [vmem:[#allocation2 + $0x598] sm:$0xff]
    %v1134 = vld [vmem:[#allocation2 + $0x5a0] sm:$0xff]
    %v1135 = vld [vmem:[#allocation2 + $0x5a8] sm:$0xff]
    %v1136 = vld [vmem:[#allocation2 + $0x5b0] sm:$0xff]
    %v1137 = vld [vmem:[#allocation2 + $0x5b8] sm:$0xff]
    %v1138 = vld [vmem:[#allocation2 + $0x5c0] sm:$0xff]
    %v1139 = vld [vmem:[#allocation2 + $0x5c8] sm:$0xff]
    %v1140 = vld [vmem:[#allocation2 + $0x5d0] sm:$0xff]
    %v1141 = vld [vmem:[#allocation2 + $0x5d8] sm:$0xff]
    %v1142 = vld [vmem:[#allocation2 + $0x5e0] sm:$0xff]
    %v1143 = vld [vmem:[#allocation2 + $0x5e8] sm:$0xff]
    %v1144 = vld [vmem:[#allocation2 + $0x5f0] sm:$0xff]
    %v1145 = vld [vmem:[#allocation2 + $0x5f8] sm:$0xff]
    %v1146 = vld [vmem:[#allocation2 + $0x600] sm:$0xff]
    %v1147 = vld [vmem:[#allocation2 + $0x608] sm:$0xff]
    %v1148 = vld [vmem:[#allocation2 + $0x610] sm:$0xff]
    %v1149 = vld [vmem:[#allocation2 + $0x618] sm:$0xff]
    %v1150 = vld [vmem:[#allocation2 + $0x620] sm:$0xff]
    %v1151 = vld [vmem:[#allocation2 + $0x628] sm:$0xff]
    %v1152 = vld [vmem:[#allocation2 + $0x630] sm:$0xff]
    %v1153 = vld [vmem:[#allocation2 + $0x638] sm:$0xff]
    %v1154 = vld [vmem:[#allocation2 + $0x640] sm:$0xff]
    %v1155 = vld [vmem:[#allocation2 + $0x648] sm:$0xff]
    %v1156 = vld [vmem:[#allocation2 + $0x650] sm:$0xff]
    %v1157 = vld [vmem:[#allocation2 + $0x658] sm:$0xff]
    %v1158 = vld [vmem:[#allocation2 + $0x660] sm:$0xff]
    %v1159 = vld [vmem:[#allocation2 + $0x668] sm:$0xff]
    %v1160 = vld [vmem:[#allocation2 + $0x670] sm:$0xff]
    %v1161 = vld [vmem:[#allocation2 + $0x678] sm:$0xff]
    %v1162 = vld [vmem:[#allocation2 + $0x680] sm:$0xff]
    %v1163 = vld [vmem:[#allocation2 + $0x688] sm:$0xff]
    %v1164 = vld [vmem:[#allocation2 + $0x690] sm:$0xff]
    %v1165 = vld [vmem:[#allocation2 + $0x698] sm:$0xff]
    %v1166 = vld [vmem:[#allocation2 + $0x6a0] sm:$0xff]
    %v1167 = vld [vmem:[#allocation2 + $0x6a8] sm:$0xff]
    %v1168 = vld [vmem:[#allocation2 + $0x6b0] sm:$0xff]
    %v1169 = vld [vmem:[#allocation2 + $0x6b8] sm:$0xff]
    %v1170 = vld [vmem:[#allocation2 + $0x6c0] sm:$0xff]
    %v1171 = vld [vmem:[#allocation2 + $0x6c8] sm:$0xff]
    %v1172 = vld [vmem:[#allocation2 + $0x6d0] sm:$0xff]
    %v1173 = vld [vmem:[#allocation2 + $0x6d8] sm:$0xff]
    %v1174 = vld [vmem:[#allocation2 + $0x6e0] sm:$0xff]
    %v1175 = vld [vmem:[#allocation2 + $0x6e8] sm:$0xff]
    %v1176 = vld [vmem:[#allocation2 + $0x6f0] sm:$0xff]
    %v1177 = vld [vmem:[#allocation2 + $0x6f8] sm:$0xff]
    %v1178 = vld [vmem:[#allocation2 + $0x700] sm:$0xff]
    %v1179 = vld [vmem:[#allocation2 + $0x708] sm:$0xff]
    %v1180 = vld [vmem:[#allocation2 + $0x710] sm:$0xff]
    %v1181 = vld [vmem:[#allocation2 + $0x718] sm:$0xff]
    %v1182 = vld [vmem:[#allocation2 + $0x720] sm:$0xff]
    %v1183 = vld [vmem:[#allocation2 + $0x728] sm:$0xff]
    %v1184 = vld [vmem:[#allocation2 + $0x730] sm:$0xff]
    %v1185 = vld [vmem:[#allocation2 + $0x738] sm:$0xff]
    %v1186 = vld [vmem:[#allocation2 + $0x740] sm:$0xff]
    %v1187 = vld [vmem:[#allocation2 + $0x748] sm:$0xff]
    %v1188 = vld [vmem:[#allocation2 + $0x750] sm:$0xff]
    %v1189 = vld [vmem:[#allocation2 + $0x758] sm:$0xff]
    %v1190 = vld [vmem:[#allocation2 + $0x760] sm:$0xff]
    %v1191 = vld [vmem:[#allocation2 + $0x768] sm:$0xff]
    %v1192 = vld [vmem:[#allocation2 + $0x770] sm:$0xff]
    %v1193 = vld [vmem:[#allocation2 + $0x778] sm:$0xff]
    %v1194 = vld [vmem:[#allocation2 + $0x780] sm:$0xff]
    %v1195 = vld [vmem:[#allocation2 + $0x788] sm:$0xff]
    %v1196 = vld [vmem:[#allocation2 + $0x790] sm:$0xff]
    %v1197 = vld [vmem:[#allocation2 + $0x798] sm:$0xff]
    %v1198 = vld [vmem:[#allocation2 + $0x7a0] sm:$0xff]
    %v1199 = vld [vmem:[#allocation2 + $0x7a8] sm:$0xff]
    %v1200 = vld [vmem:[#allocation2 + $0x7b0] sm:$0xff]
    %v1201 = vld [vmem:[#allocation2 + $0x7b8] sm:$0xff]
    %v1202 = vld [vmem:[#allocation2 + $0x7c0] sm:$0xff]
    %v1203 = vld [vmem:[#allocation2 + $0x7c8] sm:$0xff]
    %v1204 = vld [vmem:[#allocation2 + $0x7d0] sm:$0xff]
    %v1205 = vld [vmem:[#allocation2 + $0x7d8] sm:$0xff]
    %v1206 = vld [vmem:[#allocation2 + $0x7e0] sm:$0xff]
    %v1207 = vld [vmem:[#allocation2 + $0x7e8] sm:$0xff]
    %v1208 = vld [vmem:[#allocation2 + $0x7f0] sm:$0xff]
    %v1209 = vld [vmem:[#allocation2 + $0x7f8] sm:$0xff]
    %1210 = vmatprep.subr.bf16.mxu0 %v955
    %1211 = vmatpush1.bf16.msra.mxu0 %v954
    %1212 = vmatprep.subr.bf16.mxu0 %v957
    %1213 = vmatpush1.bf16.msra.mxu0 %v956
    %1214 = vmatprep.subr.bf16.mxu0 %v959
    %1215 = vmatpush1.bf16.msra.mxu0 %v958
    %1216 = vmatprep.subr.bf16.mxu0 %v961
    %1217 = vmatpush1.bf16.msra.mxu0 %v960
    %1218 = vmatprep.subr.bf16.mxu0 %v963
    %1219 = vmatpush1.bf16.msra.mxu0 %v962
    %1220 = vmatprep.subr.bf16.mxu0 %v965
    %1221 = vmatpush1.bf16.msra.mxu0 %v964
    %1222 = vmatprep.subr.bf16.mxu0 %v967
    %1223 = vmatpush1.bf16.msra.mxu0 %v966
    %1224 = vmatprep.subr.bf16.mxu0 %v969
    %1225 = vmatpush1.bf16.msra.mxu0 %v968
    %1226 = vmatprep.subr.bf16.mxu0 %v971
    %1227 = vmatpush1.bf16.msra.mxu0 %v970
    %1228 = vmatprep.subr.bf16.mxu0 %v973
    %1229 = vmatpush1.bf16.msra.mxu0 %v972
    %1230 = vmatprep.subr.bf16.mxu0 %v975
    %1231 = vmatpush1.bf16.msra.mxu0 %v974
    %1232 = vmatprep.subr.bf16.mxu0 %v977
    %1233 = vmatpush1.bf16.msra.mxu0 %v976
    %1234 = vmatprep.subr.bf16.mxu0 %v979
    %1235 = vmatpush1.bf16.msra.mxu0 %v978
    %1236 = vmatprep.subr.bf16.mxu0 %v981
    %1237 = vmatpush1.bf16.msra.mxu0 %v980
    %1238 = vmatprep.subr.bf16.mxu0 %v983
    %1239 = vmatpush1.bf16.msra.mxu0 %v982
    %1240 = vmatprep.subr.bf16.mxu0 %v985
    %1241 = vmatpush1.bf16.msra.mxu0 %v984
    %1242 = vmatprep.mubr.bf16.mxu0 %v939
    %1243 = vmatmul.mubr.bf16.gmra.mrb[0].mxu0 %v938
    %v1244 = vpop.f32.mrb[0].mxu0
    %v1245 = vadd.f32 0.0, %v1244
    %v1246 = vpop.f32.mrb[0].mxu0
    %v1247 = vadd.f32 0.0, %v1246
    %v1248 = vpop.f32.mrb[0].mxu0
    %v1249 = vpop.f32.mrb[0].mxu0
    %1250 = vdwg.mxu0
    %1251 = vmatprep.subr.bf16.mxu0 %v987
    %1252 = vmatpush1.bf16.msra.mxu0 %v986
    %1253 = vmatprep.subr.bf16.mxu0 %v989
    %1254 = vmatpush1.bf16.msra.mxu0 %v988
    %1255 = vmatprep.subr.bf16.mxu0 %v991
    %1256 = vmatpush1.bf16.msra.mxu0 %v990
    %1257 = vmatprep.subr.bf16.mxu0 %v993
    %1258 = vmatpush1.bf16.msra.mxu0 %v992
    %1259 = vmatprep.subr.bf16.mxu0 %v995
    %1260 = vmatpush1.bf16.msra.mxu0 %v994
    %1261 = vmatprep.subr.bf16.mxu0 %v997
    %1262 = vmatpush1.bf16.msra.mxu0 %v996
    %1263 = vmatprep.subr.bf16.mxu0 %v999
    %1264 = vmatpush1.bf16.msra.mxu0 %v998
    %1265 = vmatprep.subr.bf16.mxu0 %v1001
    %1266 = vmatpush1.bf16.msra.mxu0 %v1000
    %1267 = vmatprep.subr.bf16.mxu0 %v1003
    %1268 = vmatpush1.bf16.msra.mxu0 %v1002
    %1269 = vmatprep.subr.bf16.mxu0 %v1005
    %1270 = vmatpush1.bf16.msra.mxu0 %v1004
    %1271 = vmatprep.subr.bf16.mxu0 %v1007
    %1272 = vmatpush1.bf16.msra.mxu0 %v1006
    %1273 = vmatprep.subr.bf16.mxu0 %v1009
    %1274 = vmatpush1.bf16.msra.mxu0 %v1008
    %1275 = vmatprep.subr.bf16.mxu0 %v1011
    %1276 = vmatpush1.bf16.msra.mxu0 %v1010
    %1277 = vmatprep.subr.bf16.mxu0 %v1013
    %1278 = vmatpush1.bf16.msra.mxu0 %v1012
    %1279 = vmatprep.subr.bf16.mxu0 %v1015
    %1280 = vmatpush1.bf16.msra.mxu0 %v1014
    %1281 = vmatprep.subr.bf16.mxu0 %v1017
    %1282 = vmatpush1.bf16.msra.mxu0 %v1016
    %1283 = vmatprep.mubr.bf16.mxu0 %v941
    %1284 = vmatmul.mubr.bf16.gmra.mrb[0].mxu0 %v940
    %v1285 = vpop.f32.mrb[0].mxu0
    %v1286 = vadd.f32 %v1245, %v1285
    %v1287 = vpop.f32.mrb[0].mxu0
    %v1288 = vadd.f32 %v1247, %v1287
    %v1289 = vpop.f32.mrb[0].mxu0
    %v1290 = vpop.f32.mrb[0].mxu0
    %1291 = vdwg.mxu0
    %1292 = vmatprep.subr.bf16.mxu0 %v1019
    %1293 = vmatpush1.bf16.msra.mxu0 %v1018
    %1294 = vmatprep.subr.bf16.mxu0 %v1021
    %1295 = vmatpush1.bf16.msra.mxu0 %v1020
    %1296 = vmatprep.subr.bf16.mxu0 %v1023
    %1297 = vmatpush1.bf16.msra.mxu0 %v1022
    %1298 = vmatprep.subr.bf16.mxu0 %v1025
    %1299 = vmatpush1.bf16.msra.mxu0 %v1024
    %1300 = vmatprep.subr.bf16.mxu0 %v1027
    %1301 = vmatpush1.bf16.msra.mxu0 %v1026
    %1302 = vmatprep.subr.bf16.mxu0 %v1029
    %1303 = vmatpush1.bf16.msra.mxu0 %v1028
    %1304 = vmatprep.subr.bf16.mxu0 %v1031
    %1305 = vmatpush1.bf16.msra.mxu0 %v1030
    %1306 = vmatprep.subr.bf16.mxu0 %v1033
    %1307 = vmatpush1.bf16.msra.mxu0 %v1032
    %1308 = vmatprep.subr.bf16.mxu0 %v1035
    %1309 = vmatpush1.bf16.msra.mxu0 %v1034
    %1310 = vmatprep.subr.bf16.mxu0 %v1037
    %1311 = vmatpush1.bf16.msra.mxu0 %v1036
    %1312 = vmatprep.subr.bf16.mxu0 %v1039
    %1313 = vmatpush1.bf16.msra.mxu0 %v1038
    %1314 = vmatprep.subr.bf16.mxu0 %v1041
    %1315 = vmatpush1.bf16.msra.mxu0 %v1040
    %1316 = vmatprep.subr.bf16.mxu0 %v1043
    %1317 = vmatpush1.bf16.msra.mxu0 %v1042
    %1318 = vmatprep.subr.bf16.mxu0 %v1045
    %1319 = vmatpush1.bf16.msra.mxu0 %v1044
    %1320 = vmatprep.subr.bf16.mxu0 %v1047
    %1321 = vmatpush1.bf16.msra.mxu0 %v1046
    %1322 = vmatprep.subr.bf16.mxu0 %v1049
    %1323 = vmatpush1.bf16.msra.mxu0 %v1048
    %1324 = vmatprep.mubr.bf16.mxu0 %v943
    %1325 = vmatmul.mubr.bf16.gmra.mrb[0].mxu0 %v942
    %v1326 = vpop.f32.mrb[0].mxu0
    %v1327 = vadd.f32 %v1286, %v1326
    %v1328 = vpop.f32.mrb[0].mxu0
    %v1329 = vadd.f32 %v1288, %v1328
    %v1330 = vpop.f32.mrb[0].mxu0
    %v1331 = vpop.f32.mrb[0].mxu0
    %1332 = vdwg.mxu0
    %1333 = vmatprep.subr.bf16.mxu0 %v1051
    %1334 = vmatpush1.bf16.msra.mxu0 %v1050
    %1335 = vmatprep.subr.bf16.mxu0 %v1053
    %1336 = vmatpush1.bf16.msra.mxu0 %v1052
    %1337 = vmatprep.subr.bf16.mxu0 %v1055
    %1338 = vmatpush1.bf16.msra.mxu0 %v1054
    %1339 = vmatprep.subr.bf16.mxu0 %v1057
    %1340 = vmatpush1.bf16.msra.mxu0 %v1056
    %1341 = vmatprep.subr.bf16.mxu0 %v1059
    %1342 = vmatpush1.bf16.msra.mxu0 %v1058
    %1343 = vmatprep.subr.bf16.mxu0 %v1061
    %1344 = vmatpush1.bf16.msra.mxu0 %v1060
    %1345 = vmatprep.subr.bf16.mxu0 %v1063
    %1346 = vmatpush1.bf16.msra.mxu0 %v1062
    %1347 = vmatprep.subr.bf16.mxu0 %v1065
    %1348 = vmatpush1.bf16.msra.mxu0 %v1064
    %1349 = vmatprep.subr.bf16.mxu0 %v1067
    %1350 = vmatpush1.bf16.msra.mxu0 %v1066
    %1351 = vmatprep.subr.bf16.mxu0 %v1069
    %1352 = vmatpush1.bf16.msra.mxu0 %v1068
    %1353 = vmatprep.subr.bf16.mxu0 %v1071
    %1354 = vmatpush1.bf16.msra.mxu0 %v1070
    %1355 = vmatprep.subr.bf16.mxu0 %v1073
    %1356 = vmatpush1.bf16.msra.mxu0 %v1072
    %1357 = vmatprep.subr.bf16.mxu0 %v1075
    %1358 = vmatpush1.bf16.msra.mxu0 %v1074
    %1359 = vmatprep.subr.bf16.mxu0 %v1077
    %1360 = vmatpush1.bf16.msra.mxu0 %v1076
    %1361 = vmatprep.subr.bf16.mxu0 %v1079
    %1362 = vmatpush1.bf16.msra.mxu0 %v1078
    %1363 = vmatprep.subr.bf16.mxu0 %v1081
    %1364 = vmatpush1.bf16.msra.mxu0 %v1080
    %1365 = vmatprep.mubr.bf16.mxu0 %v945
    %1366 = vmatmul.mubr.bf16.gmra.mrb[0].mxu0 %v944
    %v1367 = vpop.f32.mrb[0].mxu0
    %v1368 = vadd.f32 %v1327, %v1367
    %v1369 = vpop.f32.mrb[0].mxu0
    %v1370 = vadd.f32 %v1329, %v1369
    %v1371 = vpop.f32.mrb[0].mxu0
    %v1372 = vpop.f32.mrb[0].mxu0
    %1373 = vdwg.mxu0
    %1374 = vmatprep.subr.bf16.mxu0 %v1083
    %1375 = vmatpush1.bf16.msra.mxu0 %v1082
    %1376 = vmatprep.subr.bf16.mxu0 %v1085
    %1377 = vmatpush1.bf16.msra.mxu0 %v1084
    %1378 = vmatprep.subr.bf16.mxu0 %v1087
    %1379 = vmatpush1.bf16.msra.mxu0 %v1086
    %1380 = vmatprep.subr.bf16.mxu0 %v1089
    %1381 = vmatpush1.bf16.msra.mxu0 %v1088
    %1382 = vmatprep.subr.bf16.mxu0 %v1091
    %1383 = vmatpush1.bf16.msra.mxu0 %v1090
    %1384 = vmatprep.subr.bf16.mxu0 %v1093
    %1385 = vmatpush1.bf16.msra.mxu0 %v1092
    %1386 = vmatprep.subr.bf16.mxu0 %v1095
    %1387 = vmatpush1.bf16.msra.mxu0 %v1094
    %1388 = vmatprep.subr.bf16.mxu0 %v1097
    %1389 = vmatpush1.bf16.msra.mxu0 %v1096
    %1390 = vmatprep.subr.bf16.mxu0 %v1099
    %1391 = vmatpush1.bf16.msra.mxu0 %v1098
    %1392 = vmatprep.subr.bf16.mxu0 %v1101
    %1393 = vmatpush1.bf16.msra.mxu0 %v1100
    %1394 = vmatprep.subr.bf16.mxu0 %v1103
    %1395 = vmatpush1.bf16.msra.mxu0 %v1102
    %1396 = vmatprep.subr.bf16.mxu0 %v1105
    %1397 = vmatpush1.bf16.msra.mxu0 %v1104
    %1398 = vmatprep.subr.bf16.mxu0 %v1107
    %1399 = vmatpush1.bf16.msra.mxu0 %v1106
    %1400 = vmatprep.subr.bf16.mxu0 %v1109
    %1401 = vmatpush1.bf16.msra.mxu0 %v1108
    %1402 = vmatprep.subr.bf16.mxu0 %v1111
    %1403 = vmatpush1.bf16.msra.mxu0 %v1110
    %1404 = vmatprep.subr.bf16.mxu0 %v1113
    %1405 = vmatpush1.bf16.msra.mxu0 %v1112
    %1406 = vmatprep.mubr.bf16.mxu0 %v947
    %1407 = vmatmul.mubr.bf16.gmra.mrb[0].mxu0 %v946
    %v1408 = vpop.f32.mrb[0].mxu0
    %v1409 = vadd.f32 %v1368, %v1408
    %v1410 = vpop.f32.mrb[0].mxu0
    %v1411 = vadd.f32 %v1370, %v1410
    %v1412 = vpop.f32.mrb[0].mxu0
    %v1413 = vpop.f32.mrb[0].mxu0
    %1414 = vdwg.mxu0
    %1415 = vmatprep.subr.bf16.mxu0 %v1115
    %1416 = vmatpush1.bf16.msra.mxu0 %v1114
    %1417 = vmatprep.subr.bf16.mxu0 %v1117
    %1418 = vmatpush1.bf16.msra.mxu0 %v1116
    %1419 = vmatprep.subr.bf16.mxu0 %v1119
    %1420 = vmatpush1.bf16.msra.mxu0 %v1118
    %1421 = vmatprep.subr.bf16.mxu0 %v1121
    %1422 = vmatpush1.bf16.msra.mxu0 %v1120
    %1423 = vmatprep.subr.bf16.mxu0 %v1123
    %1424 = vmatpush1.bf16.msra.mxu0 %v1122
    %1425 = vmatprep.subr.bf16.mxu0 %v1125
    %1426 = vmatpush1.bf16.msra.mxu0 %v1124
    %1427 = vmatprep.subr.bf16.mxu0 %v1127
    %1428 = vmatpush1.bf16.msra.mxu0 %v1126
    %1429 = vmatprep.subr.bf16.mxu0 %v1129
    %1430 = vmatpush1.bf16.msra.mxu0 %v1128
    %1431 = vmatprep.subr.bf16.mxu0 %v1131
    %1432 = vmatpush1.bf16.msra.mxu0 %v1130
    %1433 = vmatprep.subr.bf16.mxu0 %v1133
    %1434 = vmatpush1.bf16.msra.mxu0 %v1132
    %1435 = vmatprep.subr.bf16.mxu0 %v1135
    %1436 = vmatpush1.bf16.msra.mxu0 %v1134
    %1437 = vmatprep.subr.bf16.mxu0 %v1137
    %1438 = vmatpush1.bf16.msra.mxu0 %v1136
    %1439 = vmatprep.subr.bf16.mxu0 %v1139
    %1440 = vmatpush1.bf16.msra.mxu0 %v1138
    %1441 = vmatprep.subr.bf16.mxu0 %v1141
    %1442 = vmatpush1.bf16.msra.mxu0 %v1140
    %1443 = vmatprep.subr.bf16.mxu0 %v1143
    %1444 = vmatpush1.bf16.msra.mxu0 %v1142
    %1445 = vmatprep.subr.bf16.mxu0 %v1145
    %1446 = vmatpush1.bf16.msra.mxu0 %v1144
    %1447 = vmatprep.mubr.bf16.mxu0 %v949
    %1448 = vmatmul.mubr.bf16.gmra.mrb[0].mxu0 %v948
    %v1449 = vpop.f32.mrb[0].mxu0
    %v1450 = vadd.f32 %v1409, %v1449
    %v1451 = vpop.f32.mrb[0].mxu0
    %v1452 = vadd.f32 %v1411, %v1451
    %v1453 = vpop.f32.mrb[0].mxu0
    %v1454 = vpop.f32.mrb[0].mxu0
    %1455 = vdwg.mxu0
    %1456 = vmatprep.subr.bf16.mxu0 %v1147
    %1457 = vmatpush1.bf16.msra.mxu0 %v1146
    %1458 = vmatprep.subr.bf16.mxu0 %v1149
    %1459 = vmatpush1.bf16.msra.mxu0 %v1148
    %1460 = vmatprep.subr.bf16.mxu0 %v1151
    %1461 = vmatpush1.bf16.msra.mxu0 %v1150
    %1462 = vmatprep.subr.bf16.mxu0 %v1153
    %1463 = vmatpush1.bf16.msra.mxu0 %v1152
    %1464 = vmatprep.subr.bf16.mxu0 %v1155
    %1465 = vmatpush1.bf16.msra.mxu0 %v1154
    %1466 = vmatprep.subr.bf16.mxu0 %v1157
    %1467 = vmatpush1.bf16.msra.mxu0 %v1156
    %1468 = vmatprep.subr.bf16.mxu0 %v1159
    %1469 = vmatpush1.bf16.msra.mxu0 %v1158
    %1470 = vmatprep.subr.bf16.mxu0 %v1161
    %1471 = vmatpush1.bf16.msra.mxu0 %v1160
    %1472 = vmatprep.subr.bf16.mxu0 %v1163
    %1473 = vmatpush1.bf16.msra.mxu0 %v1162
    %1474 = vmatprep.subr.bf16.mxu0 %v1165
    %1475 = vmatpush1.bf16.msra.mxu0 %v1164
    %1476 = vmatprep.subr.bf16.mxu0 %v1167
    %1477 = vmatpush1.bf16.msra.mxu0 %v1166
    %1478 = vmatprep.subr.bf16.mxu0 %v1169
    %1479 = vmatpush1.bf16.msra.mxu0 %v1168
    %1480 = vmatprep.subr.bf16.mxu0 %v1171
    %1481 = vmatpush1.bf16.msra.mxu0 %v1170
    %1482 = vmatprep.subr.bf16.mxu0 %v1173
    %1483 = vmatpush1.bf16.msra.mxu0 %v1172
    %1484 = vmatprep.subr.bf16.mxu0 %v1175
    %1485 = vmatpush1.bf16.msra.mxu0 %v1174
    %1486 = vmatprep.subr.bf16.mxu0 %v1177
    %1487 = vmatpush1.bf16.msra.mxu0 %v1176
    %1488 = vmatprep.mubr.bf16.mxu0 %v951
    %1489 = vmatmul.mubr.bf16.gmra.mrb[0].mxu0 %v950
    %v1490 = vpop.f32.mrb[0].mxu0
    %v1491 = vadd.f32 %v1450, %v1490
    %v1492 = vpop.f32.mrb[0].mxu0
    %v1493 = vadd.f32 %v1452, %v1492
    %v1494 = vpop.f32.mrb[0].mxu0
    %v1495 = vpop.f32.mrb[0].mxu0
    %1496 = vdwg.mxu0
    %1497 = vmatprep.subr.bf16.mxu0 %v1179
    %1498 = vmatpush1.bf16.msra.mxu0 %v1178
    %1499 = vmatprep.subr.bf16.mxu0 %v1181
    %1500 = vmatpush1.bf16.msra.mxu0 %v1180
    %1501 = vmatprep.subr.bf16.mxu0 %v1183
    %1502 = vmatpush1.bf16.msra.mxu0 %v1182
    %1503 = vmatprep.subr.bf16.mxu0 %v1185
    %1504 = vmatpush1.bf16.msra.mxu0 %v1184
    %1505 = vmatprep.subr.bf16.mxu0 %v1187
    %1506 = vmatpush1.bf16.msra.mxu0 %v1186
    %1507 = vmatprep.subr.bf16.mxu0 %v1189
    %1508 = vmatpush1.bf16.msra.mxu0 %v1188
    %1509 = vmatprep.subr.bf16.mxu0 %v1191
    %1510 = vmatpush1.bf16.msra.mxu0 %v1190
    %1511 = vmatprep.subr.bf16.mxu0 %v1193
    %1512 = vmatpush1.bf16.msra.mxu0 %v1192
    %1513 = vmatprep.subr.bf16.mxu0 %v1195
    %1514 = vmatpush1.bf16.msra.mxu0 %v1194
    %1515 = vmatprep.subr.bf16.mxu0 %v1197
    %1516 = vmatpush1.bf16.msra.mxu0 %v1196
    %1517 = vmatprep.subr.bf16.mxu0 %v1199
    %1518 = vmatpush1.bf16.msra.mxu0 %v1198
    %1519 = vmatprep.subr.bf16.mxu0 %v1201
    %1520 = vmatpush1.bf16.msra.mxu0 %v1200
    %1521 = vmatprep.subr.bf16.mxu0 %v1203
    %1522 = vmatpush1.bf16.msra.mxu0 %v1202
    %1523 = vmatprep.subr.bf16.mxu0 %v1205
    %1524 = vmatpush1.bf16.msra.mxu0 %v1204
    %1525 = vmatprep.subr.bf16.mxu0 %v1207
    %1526 = vmatpush1.bf16.msra.mxu0 %v1206
    %1527 = vmatprep.subr.bf16.mxu0 %v1209
    %1528 = vmatpush1.bf16.msra.mxu0 %v1208
    %1529 = vmatprep.mubr.bf16.mxu0 %v953
    %1530 = vmatmul.mubr.bf16.gmra.mrb[0].mxu0 %v952
    %v1531 = vpop.f32.mrb[0].mxu0
    %v1532 = vadd.f32 %v1491, %v1531
    %v1533 = vpop.f32.mrb[0].mxu0
    %v1534 = vadd.f32 %v1493, %v1533
    %v1535 = vpop.f32.mrb[0].mxu0
    %v1536 = vpop.f32.mrb[0].mxu0
    %1537 = vdwg.mxu0
    %v1538 = vrot.slane %v1532, 4
    %v1539 = vadd.f32 %v1532, %v1538
    %v1540 = vrot.slane %v1539, 2
    %v1541 = vadd.f32 %v1539, %v1540
    %v1542 = vrot.slane %v1541, 1
    %v1543 = vadd.f32 %v1541, %v1542
    %v1544 = vrot.slane %v1534, 4
    %v1545 = vadd.f32 %v1534, %v1544
    %v1546 = vrot.slane %v1545, 2
    %v1547 = vadd.f32 %v1545, %v1546
    %v1548 = vrot.slane %v1547, 1
    %v1549 = vadd.f32 %v1547, %v1548
    %v1550 = vmul.f32 %v1532, %v1532
    %v1551 = vmul.f32 %v1534, %v1534
    %v1552 = vrot.slane %v1550, 4
    %v1553 = vadd.f32 %v1550, %v1552
    %v1554 = vrot.slane %v1553, 2
    %v1555 = vadd.f32 %v1553, %v1554
    %v1556 = vrot.slane %v1555, 1
    %v1557 = vadd.f32 %v1555, %v1556
    %v1558 = vrot.slane %v1551, 4
    %v1559 = vadd.f32 %v1551, %v1558
    %v1560 = vrot.slane %v1559, 2
    %v1561 = vadd.f32 %v1559, %v1560
    %v1562 = vrot.slane %v1561, 1
    %v1563 = vadd.f32 %v1561, %v1562
    %v1564 = vmul.f32 %v1543, 0.125
    %v1565 = vmul.f32 %v1549, 0.125
    %v1566 = vmul.f32 %v1557, 0.125
    %v1567 = vmul.f32 %v1563, 0.125
    %v1568 = vmul.f32 %v1564, %v1564
    %v1569 = vmul.f32 %v1565, %v1565
    %v1570 = vsub.f32 %v1566, %v1568
    %v1571 = vsub.f32 %v1567, %v1569
    %v1572 = vmax.f32 %v1570, 0.0
    %v1573 = vmax.f32 %v1571, 0.0
    %v1574 = vadd.f32 %v1572, 1e-05
    %v1575 = vadd.f32 %v1573, 1e-05
    %v1576 = vrsqrt.pop %v1574
    %v1577 = vrsqrt.pop %v1575
    %v1580 = vcombine.low %v1576, %v1577
    %v1582 = vunpack.c.l.s4 1966171168
    %v1583 = vunpack.c.0.s8 %v1582
    %v1584 = vlaneseq
    %v1585 = vshrl.u32 %v1584, 7
    %v1586 = vsub.s32 %v1583, %v1585
    %v1587 = vrot.slane %v1580, %v1586
    %v1589 = vunpack.c.l.s4 1966171168
    %v1590 = vunpack.c.0.s8 %v1589
    %v1591 = vlaneseq
    %v1592 = vshrl.u32 %v1591, 7
    %v1593 = vsub.s32 %v1590, %v1592
    %v1594 = vrot.slane %v1587, %v1593
    %v1596 = vmul.f32 %v140, %v1594
    %v1598 = vlaneseq
    %v1599 = vshrl.u32 %v1598, 7
    %v1600 = vsub.s32 0, %v1599
    %v1601 = vrot.slane %v1596, %v1600
    %v1602 = vlaneseq
    %v1603 = vshrl.u32 %v1602, 7
    %v1604 = vsub.s32 1, %v1603
    %v1605 = vrot.slane %v1596, %v1604
    %v1608 = vmul.f32 %v1564, %v1601
    %v1609 = vmul.f32 %v1565, %v1605
    %v1612 = vcombine.low %v1608, %v1609
    %v1614 = vunpack.c.l.s4 1966171168
    %v1615 = vunpack.c.0.s8 %v1614
    %v1616 = vlaneseq
    %v1617 = vshrl.u32 %v1616, 7
    %v1618 = vsub.s32 %v1615, %v1617
    %v1619 = vrot.slane %v1612, %v1618
    %v1621 = vunpack.c.l.s4 1966171168
    %v1622 = vunpack.c.0.s8 %v1621
    %v1623 = vlaneseq
    %v1624 = vshrl.u32 %v1623, 7
    %v1625 = vsub.s32 %v1622, %v1624
    %v1626 = vrot.slane %v1619, %v1625
    %v1628 = vsub.f32 %v142, %v1626
    %v1629 = vmul.f32 %v1532, %v1601
    %v1630 = vmul.f32 %v1534, %v1605
    %v1632 = vlaneseq
    %v1633 = vshrl.u32 %v1632, 7
    %v1634 = vsub.s32 0, %v1633
    %v1635 = vrot.slane %v1628, %v1634
    %v1636 = vlaneseq
    %v1637 = vshrl.u32 %v1636, 7
    %v1638 = vsub.s32 1, %v1637
    %v1639 = vrot.slane %v1628, %v1638
    %v1642 = vadd.f32 %v1629, %v1635
    %v1643 = vadd.f32 %v1630, %v1639
    %v1644 = vmax.f32 %v1642, 0.0
    %v1645 = vmax.f32 %v1643, 0.0
    %s1646 = smul.u32 4, 32
    %s1647 = smul.u32 %s1646, 4
    %s1648 = sshll.u32 %s1647, 4
    %1649 = dma.done %s77, %s1648
    %v1650 = vpack.c.bf16 %v1644, %v1644
    %v1651 = vpack.c.bf16 %v1645, %v1645
    %v1652 = vld [vmem:[#allocation3] sm:$0xff]
    %v1653 = vld [vmem:[#allocation3 + $0x8] sm:$0xff]
    %v1654 = vld [vmem:[#allocation3 + $0x10] sm:$0xff]
    %v1655 = vld [vmem:[#allocation3 + $0x18] sm:$0xff]
    %v1656 = vld [vmem:[#allocation3 + $0x20] sm:$0xff]
    %v1657 = vld [vmem:[#allocation3 + $0x28] sm:$0xff]
    %v1658 = vld [vmem:[#allocation3 + $0x30] sm:$0xff]
    %v1659 = vld [vmem:[#allocation3 + $0x38] sm:$0xff]
    %v1660 = vld [vmem:[#allocation3 + $0x40] sm:$0xff]
    %v1661 = vld [vmem:[#allocation3 + $0x48] sm:$0xff]
    %v1662 = vld [vmem:[#allocation3 + $0x50] sm:$0xff]
    %v1663 = vld [vmem:[#allocation3 + $0x58] sm:$0xff]
    %v1664 = vld [vmem:[#allocation3 + $0x60] sm:$0xff]
    %v1665 = vld [vmem:[#allocation3 + $0x68] sm:$0xff]
    %v1666 = vld [vmem:[#allocation3 + $0x70] sm:$0xff]
    %v1667 = vld [vmem:[#allocation3 + $0x78] sm:$0xff]
    %v1668 = vld [vmem:[#allocation3 + $0x80] sm:$0xff]
    %v1669 = vld [vmem:[#allocation3 + $0x88] sm:$0xff]
    %v1670 = vld [vmem:[#allocation3 + $0x90] sm:$0xff]
    %v1671 = vld [vmem:[#allocation3 + $0x98] sm:$0xff]
    %v1672 = vld [vmem:[#allocation3 + $0xa0] sm:$0xff]
    %v1673 = vld [vmem:[#allocation3 + $0xa8] sm:$0xff]
    %v1674 = vld [vmem:[#allocation3 + $0xb0] sm:$0xff]
    %v1675 = vld [vmem:[#allocation3 + $0xb8] sm:$0xff]
    %v1676 = vld [vmem:[#allocation3 + $0xc0] sm:$0xff]
    %v1677 = vld [vmem:[#allocation3 + $0xc8] sm:$0xff]
    %v1678 = vld [vmem:[#allocation3 + $0xd0] sm:$0xff]
    %v1679 = vld [vmem:[#allocation3 + $0xd8] sm:$0xff]
    %v1680 = vld [vmem:[#allocation3 + $0xe0] sm:$0xff]
    %v1681 = vld [vmem:[#allocation3 + $0xe8] sm:$0xff]
    %v1682 = vld [vmem:[#allocation3 + $0xf0] sm:$0xff]
    %v1683 = vld [vmem:[#allocation3 + $0xf8] sm:$0xff]
    %v1684 = vld [vmem:[#allocation3 + $0x100] sm:$0xff]
    %v1685 = vld [vmem:[#allocation3 + $0x108] sm:$0xff]
    %v1686 = vld [vmem:[#allocation3 + $0x110] sm:$0xff]
    %v1687 = vld [vmem:[#allocation3 + $0x118] sm:$0xff]
    %v1688 = vld [vmem:[#allocation3 + $0x120] sm:$0xff]
    %v1689 = vld [vmem:[#allocation3 + $0x128] sm:$0xff]
    %v1690 = vld [vmem:[#allocation3 + $0x130] sm:$0xff]
    %v1691 = vld [vmem:[#allocation3 + $0x138] sm:$0xff]
    %v1692 = vld [vmem:[#allocation3 + $0x140] sm:$0xff]
    %v1693 = vld [vmem:[#allocation3 + $0x148] sm:$0xff]
    %v1694 = vld [vmem:[#allocation3 + $0x150] sm:$0xff]
    %v1695 = vld [vmem:[#allocation3 + $0x158] sm:$0xff]
    %v1696 = vld [vmem:[#allocation3 + $0x160] sm:$0xff]
    %v1697 = vld [vmem:[#allocation3 + $0x168] sm:$0xff]
    %v1698 = vld [vmem:[#allocation3 + $0x170] sm:$0xff]
    %v1699 = vld [vmem:[#allocation3 + $0x178] sm:$0xff]
    %v1700 = vld [vmem:[#allocation3 + $0x180] sm:$0xff]
    %v1701 = vld [vmem:[#allocation3 + $0x188] sm:$0xff]
    %v1702 = vld [vmem:[#allocation3 + $0x190] sm:$0xff]
    %v1703 = vld [vmem:[#allocation3 + $0x198] sm:$0xff]
    %v1704 = vld [vmem:[#allocation3 + $0x1a0] sm:$0xff]
    %v1705 = vld [vmem:[#allocation3 + $0x1a8] sm:$0xff]
    %v1706 = vld [vmem:[#allocation3 + $0x1b0] sm:$0xff]
    %v1707 = vld [vmem:[#allocation3 + $0x1b8] sm:$0xff]
    %v1708 = vld [vmem:[#allocation3 + $0x1c0] sm:$0xff]
    %v1709 = vld [vmem:[#allocation3 + $0x1c8] sm:$0xff]
    %v1710 = vld [vmem:[#allocation3 + $0x1d0] sm:$0xff]
    %v1711 = vld [vmem:[#allocation3 + $0x1d8] sm:$0xff]
    %v1712 = vld [vmem:[#allocation3 + $0x1e0] sm:$0xff]
    %v1713 = vld [vmem:[#allocation3 + $0x1e8] sm:$0xff]
    %v1714 = vld [vmem:[#allocation3 + $0x1f0] sm:$0xff]
    %v1715 = vld [vmem:[#allocation3 + $0x1f8] sm:$0xff]
    %1716 = vmatprep.subr.bf16.mxu0 %v1653
    %1717 = vmatpush1.bf16.msra.mxu0 %v1652
    %1718 = vmatprep.subr.bf16.mxu0 %v1657
    %1719 = vmatpush1.bf16.msra.mxu0 %v1656
    %1720 = vmatprep.subr.bf16.mxu0 %v1661
    %1721 = vmatpush1.bf16.msra.mxu0 %v1660
    %1722 = vmatprep.subr.bf16.mxu0 %v1665
    %1723 = vmatpush1.bf16.msra.mxu0 %v1664
    %1724 = vmatprep.subr.bf16.mxu0 %v1669
    %1725 = vmatpush1.bf16.msra.mxu0 %v1668
    %1726 = vmatprep.subr.bf16.mxu0 %v1673
    %1727 = vmatpush1.bf16.msra.mxu0 %v1672
    %1728 = vmatprep.subr.bf16.mxu0 %v1677
    %1729 = vmatpush1.bf16.msra.mxu0 %v1676
    %1730 = vmatprep.subr.bf16.mxu0 %v1681
    %1731 = vmatpush1.bf16.msra.mxu0 %v1680
    %1732 = vmatprep.subr.bf16.mxu0 %v1685
    %1733 = vmatpush1.bf16.msra.mxu0 %v1684
    %1734 = vmatprep.subr.bf16.mxu0 %v1689
    %1735 = vmatpush1.bf16.msra.mxu0 %v1688
    %1736 = vmatprep.subr.bf16.mxu0 %v1693
    %1737 = vmatpush1.bf16.msra.mxu0 %v1692
    %1738 = vmatprep.subr.bf16.mxu0 %v1697
    %1739 = vmatpush1.bf16.msra.mxu0 %v1696
    %1740 = vmatprep.subr.bf16.mxu0 %v1701
    %1741 = vmatpush1.bf16.msra.mxu0 %v1700
    %1742 = vmatprep.subr.bf16.mxu0 %v1705
    %1743 = vmatpush1.bf16.msra.mxu0 %v1704
    %1744 = vmatprep.subr.bf16.mxu0 %v1709
    %1745 = vmatpush1.bf16.msra.mxu0 %v1708
    %1746 = vmatprep.subr.bf16.mxu0 %v1713
    %1747 = vmatpush1.bf16.msra.mxu0 %v1712
    %1748 = vmatprep.mubr.bf16.mxu0 %v1651
    %1749 = vmatmul.mubr.bf16.gmra.mrb[0].mxu0 %v1650
    %v1750 = vpop.f32.mrb[0].mxu0
    %v1751 = vadd.f32 0.0, %v1750
    %v1752 = vpop.f32.mrb[0].mxu0
    %v1753 = vadd.f32 0.0, %v1752
    %v1754 = vpop.f32.mrb[0].mxu0
    %v1755 = vpop.f32.mrb[0].mxu0
    %1756 = vdwg.mxu0
    %1757 = vmatprep.subr.bf16.mxu0 %v1655
    %1758 = vmatpush1.bf16.msra.mxu0 %v1654
    %1759 = vmatprep.subr.bf16.mxu0 %v1659
    %1760 = vmatpush1.bf16.msra.mxu0 %v1658
    %1761 = vmatprep.subr.bf16.mxu0 %v1663
    %1762 = vmatpush1.bf16.msra.mxu0 %v1662
    %1763 = vmatprep.subr.bf16.mxu0 %v1667
    %1764 = vmatpush1.bf16.msra.mxu0 %v1666
    %1765 = vmatprep.subr.bf16.mxu0 %v1671
    %1766 = vmatpush1.bf16.msra.mxu0 %v1670
    %1767 = vmatprep.subr.bf16.mxu0 %v1675
    %1768 = vmatpush1.bf16.msra.mxu0 %v1674
    %1769 = vmatprep.subr.bf16.mxu0 %v1679
    %1770 = vmatpush1.bf16.msra.mxu0 %v1678
    %1771 = vmatprep.subr.bf16.mxu0 %v1683
    %1772 = vmatpush1.bf16.msra.mxu0 %v1682
    %1773 = vmatprep.subr.bf16.mxu0 %v1687
    %1774 = vmatpush1.bf16.msra.mxu0 %v1686
    %1775 = vmatprep.subr.bf16.mxu0 %v1691
    %1776 = vmatpush1.bf16.msra.mxu0 %v1690
    %1777 = vmatprep.subr.bf16.mxu0 %v1695
    %1778 = vmatpush1.bf16.msra.mxu0 %v1694
    %1779 = vmatprep.subr.bf16.mxu0 %v1699
    %1780 = vmatpush1.bf16.msra.mxu0 %v1698
    %1781 = vmatprep.subr.bf16.mxu0 %v1703
    %1782 = vmatpush1.bf16.msra.mxu0 %v1702
    %1783 = vmatprep.subr.bf16.mxu0 %v1707
    %1784 = vmatpush1.bf16.msra.mxu0 %v1706
    %1785 = vmatprep.subr.bf16.mxu0 %v1711
    %1786 = vmatpush1.bf16.msra.mxu0 %v1710
    %1787 = vmatprep.subr.bf16.mxu0 %v1715
    %1788 = vmatpush1.bf16.msra.mxu0 %v1714
    %1789 = vmatprep.mubr.bf16.mxu0 %v1651
    %1790 = vmatmul.mubr.bf16.gmra.mrb[0].mxu0 %v1650
    %v1791 = vpop.f32.mrb[0].mxu0
    %v1792 = vadd.f32 0.0, %v1791
    %v1793 = vpop.f32.mrb[0].mxu0
    %v1794 = vadd.f32 0.0, %v1793
    %v1795 = vpop.f32.mrb[0].mxu0
    %v1796 = vpop.f32.mrb[0].mxu0
    %1797 = vdwg.mxu0
    %v1798 = vrot.slane %v1751, 4
    %v1799 = vadd.f32 %v1751, %v1798
    %v1800 = vrot.slane %v1799, 2
    %v1801 = vadd.f32 %v1799, %v1800
    %v1802 = vrot.slane %v1801, 1
    %v1803 = vadd.f32 %v1801, %v1802
    %v1804 = vrot.slane %v1753, 4
    %v1805 = vadd.f32 %v1753, %v1804
    %v1806 = vrot.slane %v1805, 2
    %v1807 = vadd.f32 %v1805, %v1806
    %v1808 = vrot.slane %v1807, 1
    %v1809 = vadd.f32 %v1807, %v1808
    %v1810 = vrot.slane %v1792, 4
    %v1811 = vadd.f32 %v1792, %v1810
    %v1812 = vrot.slane %v1811, 2
    %v1813 = vadd.f32 %v1811, %v1812
    %v1814 = vrot.slane %v1813, 1
    %v1815 = vadd.f32 %v1813, %v1814
    %v1816 = vrot.slane %v1794, 4
    %v1817 = vadd.f32 %v1794, %v1816
    %v1818 = vrot.slane %v1817, 2
    %v1819 = vadd.f32 %v1817, %v1818
    %v1820 = vrot.slane %v1819, 1
    %v1821 = vadd.f32 %v1819, %v1820
    %v1822 = vmul.f32 %v1751, %v1751
    %v1823 = vmul.f32 %v1753, %v1753
    %v1824 = vmul.f32 %v1792, %v1792
    %v1825 = vmul.f32 %v1794, %v1794
    %v1826 = vrot.slane %v1822, 4
    %v1827 = vadd.f32 %v1822, %v1826
    %v1828 = vrot.slane %v1827, 2
    %v1829 = vadd.f32 %v1827, %v1828
    %v1830 = vrot.slane %v1829, 1
    %v1831 = vadd.f32 %v1829, %v1830
    %v1832 = vrot.slane %v1823, 4
    %v1833 = vadd.f32 %v1823, %v1832
    %v1834 = vrot.slane %v1833, 2
    %v1835 = vadd.f32 %v1833, %v1834
    %v1836 = vrot.slane %v1835, 1
    %v1837 = vadd.f32 %v1835, %v1836
    %v1838 = vrot.slane %v1824, 4
    %v1839 = vadd.f32 %v1824, %v1838
    %v1840 = vrot.slane %v1839, 2
    %v1841 = vadd.f32 %v1839, %v1840
    %v1842 = vrot.slane %v1841, 1
    %v1843 = vadd.f32 %v1841, %v1842
    %v1844 = vrot.slane %v1825, 4
    %v1845 = vadd.f32 %v1825, %v1844
    %v1846 = vrot.slane %v1845, 2
    %v1847 = vadd.f32 %v1845, %v1846
    %v1848 = vrot.slane %v1847, 1
    %v1849 = vadd.f32 %v1847, %v1848
    %v1850 = vmul.f32 %v1803, 0.125
    %v1851 = vmul.f32 %v1809, 0.125
    %v1852 = vmul.f32 %v1815, 0.125
    %v1853 = vmul.f32 %v1821, 0.125
    %v1854 = vmul.f32 %v1831, 0.125
    %v1855 = vmul.f32 %v1837, 0.125
    %v1856 = vmul.f32 %v1843, 0.125
    %v1857 = vmul.f32 %v1849, 0.125
    %v1858 = vmul.f32 %v1850, %v1850
    %v1859 = vmul.f32 %v1851, %v1851
    %v1860 = vmul.f32 %v1852, %v1852
    %v1861 = vmul.f32 %v1853, %v1853
    %v1862 = vsub.f32 %v1854, %v1858
    %v1863 = vsub.f32 %v1855, %v1859
    %v1864 = vsub.f32 %v1856, %v1860
    %v1865 = vsub.f32 %v1857, %v1861
    %v1866 = vmax.f32 %v1862, 0.0
    %v1867 = vmax.f32 %v1863, 0.0
    %v1868 = vmax.f32 %v1864, 0.0
    %v1869 = vmax.f32 %v1865, 0.0
    %v1870 = vadd.f32 %v1866, 1e-05
    %v1871 = vadd.f32 %v1867, 1e-05
    %v1872 = vadd.f32 %v1868, 1e-05
    %v1873 = vadd.f32 %v1869, 1e-05
    %v1874 = vrsqrt.pop %v1870
    %v1875 = vrsqrt.pop %v1871
    %v1876 = vrsqrt.pop %v1872
    %v1877 = vrsqrt.pop %v1873
    %v1882 = vcombine.low %v1874, %v1875
    %v1883 = vcombine.low %v1876, %v1877
    %v1885 = vunpack.c.l.s4 1966171168
    %v1886 = vunpack.c.0.s8 %v1885
    %v1887 = vlaneseq
    %v1888 = vshrl.u32 %v1887, 7
    %v1889 = vsub.s32 %v1886, %v1888
    %v1890 = vrot.slane %v1882, %v1889
    %v1892 = vunpack.c.l.s4 1966171168
    %v1893 = vunpack.c.0.s8 %v1892
    %v1894 = vlaneseq
    %v1895 = vshrl.u32 %v1894, 7
    %v1896 = vsub.s32 %v1893, %v1895
    %v1897 = vrot.slane %v1883, %v1896
    %v1898 = vcombine.low %v1890, %v1897
    %v1900 = vunpack.c.l.s4 1966171168
    %v1901 = vunpack.c.0.s8 %v1900
    %v1902 = vlaneseq
    %v1903 = vshrl.u32 %v1902, 7
    %v1904 = vsub.s32 %v1901, %v1903
    %v1905 = vrot.slane %v1898, %v1904
    %v1907 = vmul.f32 %v144, %v1905
    %v1909 = vlaneseq
    %v1910 = vshrl.u32 %v1909, 7
    %v1911 = vsub.s32 0, %v1910
    %v1912 = vrot.slane %v1907, %v1911
    %v1913 = vlaneseq
    %v1914 = vshrl.u32 %v1913, 7
    %v1915 = vsub.s32 1, %v1914
    %v1916 = vrot.slane %v1907, %v1915
    %v1917 = vlaneseq
    %v1918 = vshrl.u32 %v1917, 7
    %v1919 = vsub.s32 2, %v1918
    %v1920 = vrot.slane %v1907, %v1919
    %v1921 = vlaneseq
    %v1922 = vshrl.u32 %v1921, 7
    %v1923 = vsub.s32 3, %v1922
    %v1924 = vrot.slane %v1907, %v1923
    %v1929 = vmul.f32 %v1850, %v1912
    %v1930 = vmul.f32 %v1851, %v1916
    %v1931 = vmul.f32 %v1852, %v1920
    %v1932 = vmul.f32 %v1853, %v1924
    %v1937 = vcombine.low %v1929, %v1930
    %v1938 = vcombine.low %v1931, %v1932
    %v1940 = vunpack.c.l.s4 1966171168
    %v1941 = vunpack.c.0.s8 %v1940
    %v1942 = vlaneseq
    %v1943 = vshrl.u32 %v1942, 7
    %v1944 = vsub.s32 %v1941, %v1943
    %v1945 = vrot.slane %v1937, %v1944
    %v1947 = vunpack.c.l.s4 1966171168
    %v1948 = vunpack.c.0.s8 %v1947
    %v1949 = vlaneseq
    %v1950 = vshrl.u32 %v1949, 7
    %v1951 = vsub.s32 %v1948, %v1950
    %v1952 = vrot.slane %v1938, %v1951
    %v1953 = vcombine.low %v1945, %v1952
    %v1955 = vunpack.c.l.s4 1966171168
    %v1956 = vunpack.c.0.s8 %v1955
    %v1957 = vlaneseq
    %v1958 = vshrl.u32 %v1957, 7
    %v1959 = vsub.s32 %v1956, %v1958
    %v1960 = vrot.slane %v1953, %v1959
    %v1962 = vsub.f32 %v146, %v1960
    %v1963 = vmul.f32 %v1751, %v1912
    %v1964 = vmul.f32 %v1753, %v1916
    %v1965 = vmul.f32 %v1792, %v1920
    %v1966 = vmul.f32 %v1794, %v1924
    %v1968 = vlaneseq
    %v1969 = vshrl.u32 %v1968, 7
    %v1970 = vsub.s32 0, %v1969
    %v1971 = vrot.slane %v1962, %v1970
    %v1972 = vlaneseq
    %v1973 = vshrl.u32 %v1972, 7
    %v1974 = vsub.s32 1, %v1973
    %v1975 = vrot.slane %v1962, %v1974
    %v1976 = vlaneseq
    %v1977 = vshrl.u32 %v1976, 7
    %v1978 = vsub.s32 2, %v1977
    %v1979 = vrot.slane %v1962, %v1978
    %v1980 = vlaneseq
    %v1981 = vshrl.u32 %v1980, 7
    %v1982 = vsub.s32 3, %v1981
    %v1983 = vrot.slane %v1962, %v1982
    %v1988 = vadd.f32 %v1963, %v1971
    %v1989 = vadd.f32 %v1964, %v1975
    %v1990 = vadd.f32 %v1965, %v1979
    %v1991 = vadd.f32 %v1966, %v1983
    %v1992 = vmax.f32 %v1988, 0.0
    %v1993 = vmax.f32 %v1989, 0.0
    %v1994 = vmax.f32 %v1990, 0.0
    %v1995 = vmax.f32 %v1991, 0.0
    %s1996 = smul.u32 4, 80
    %s1997 = smul.u32 %s1996, 1
    %s1998 = sshll.u32 %s1997, 4
    %1999 = dma.done %s112, %s1998
    %v2000 = vpack.c.bf16 %v1992, %v1992
    %v2001 = vpack.c.bf16 %v1993, %v1993
    %v2002 = vpack.c.bf16 %v1994, %v1994
    %v2003 = vpack.c.bf16 %v1995, %v1995
    %v2004 = vld [vmem:[#allocation4] sm:$0xff]
    %v2005 = vld [vmem:[#allocation4 + $0x8] sm:$0xff]
    %v2006 = vld [vmem:[#allocation4 + $0x10] sm:$0xff]
    %v2007 = vld [vmem:[#allocation4 + $0x18] sm:$0xff]
    %v2008 = vld [vmem:[#allocation4 + $0x20] sm:$0xff]
    %v2009 = vld [vmem:[#allocation4 + $0x28] sm:$0xff]
    %v2010 = vld [vmem:[#allocation4 + $0x30] sm:$0xff]
    %v2011 = vld [vmem:[#allocation4 + $0x38] sm:$0xff]
    %v2012 = vld [vmem:[#allocation4 + $0x40] sm:$0xff]
    %v2013 = vld [vmem:[#allocation4 + $0x48] sm:$0xff]
    %v2014 = vld [vmem:[#allocation4 + $0x50] sm:$0xff]
    %v2015 = vld [vmem:[#allocation4 + $0x58] sm:$0xff]
    %v2016 = vld [vmem:[#allocation4 + $0x60] sm:$0xff]
    %v2017 = vld [vmem:[#allocation4 + $0x68] sm:$0xff]
    %v2018 = vld [vmem:[#allocation4 + $0x70] sm:$0xff]
    %v2019 = vld [vmem:[#allocation4 + $0x78] sm:$0xff]
    %v2020 = vld [vmem:[#allocation4 + $0x80] sm:$0xff]
    %v2021 = vld [vmem:[#allocation4 + $0x88] sm:$0xff]
    %v2022 = vld [vmem:[#allocation4 + $0x90] sm:$0xff]
    %v2023 = vld [vmem:[#allocation4 + $0x98] sm:$0xff]
    %v2024 = vld [vmem:[#allocation4 + $0xa0] sm:$0xff]
    %v2025 = vld [vmem:[#allocation4 + $0xa8] sm:$0xff]
    %v2026 = vld [vmem:[#allocation4 + $0xb0] sm:$0xff]
    %v2027 = vld [vmem:[#allocation4 + $0xb8] sm:$0xff]
    %v2028 = vld [vmem:[#allocation4 + $0xc0] sm:$0xff]
    %v2029 = vld [vmem:[#allocation4 + $0xc8] sm:$0xff]
    %v2030 = vld [vmem:[#allocation4 + $0xd0] sm:$0xff]
    %v2031 = vld [vmem:[#allocation4 + $0xd8] sm:$0xff]
    %v2032 = vld [vmem:[#allocation4 + $0xe0] sm:$0xff]
    %v2033 = vld [vmem:[#allocation4 + $0xe8] sm:$0xff]
    %v2034 = vld [vmem:[#allocation4 + $0xf0] sm:$0xff]
    %v2035 = vld [vmem:[#allocation4 + $0xf8] sm:$0xff]
    %2036 = vmatprep.subr.bf16.mxu0 0
    %2037 = vmatpush1.bf16.msra.mxu0 %v2004
    %2038 = vmatprep.subr.bf16.mxu0 0
    %2039 = vmatpush1.bf16.msra.mxu0 %v2005
    %2040 = vmatprep.subr.bf16.mxu0 0
    %2041 = vmatpush1.bf16.msra.mxu0 %v2006
    %2042 = vmatprep.subr.bf16.mxu0 0
    %2043 = vmatpush1.bf16.msra.mxu0 %v2007
    %2044 = vmatprep.subr.bf16.mxu0 0
    %2045 = vmatpush1.bf16.msra.mxu0 %v2008
    %2046 = vmatprep.subr.bf16.mxu0 0
    %2047 = vmatpush1.bf16.msra.mxu0 %v2009
    %2048 = vmatprep.subr.bf16.mxu0 0
    %2049 = vmatpush1.bf16.msra.mxu0 %v2010
    %2050 = vmatprep.subr.bf16.mxu0 0
    %2051 = vmatpush1.bf16.msra.mxu0 %v2011
    %2052 = vmatprep.subr.bf16.mxu0 0
    %2053 = vmatpush1.bf16.msra.mxu0 %v2012
    %2054 = vmatprep.subr.bf16.mxu0 0
    %2055 = vmatpush1.bf16.msra.mxu0 %v2013
    %2056 = vmatprep.subr.bf16.mxu0 0
    %2057 = vmatpush1.bf16.msra.mxu0 %v2014
    %2058 = vmatprep.subr.bf16.mxu0 0
    %2059 = vmatpush1.bf16.msra.mxu0 %v2015
    %2060 = vmatprep.subr.bf16.mxu0 0
    %2061 = vmatpush1.bf16.msra.mxu0 %v2016
    %2062 = vmatprep.subr.bf16.mxu0 0
    %2063 = vmatpush1.bf16.msra.mxu0 %v2017
    %2064 = vmatprep.subr.bf16.mxu0 0
    %2065 = vmatpush1.bf16.msra.mxu0 %v2018
    %2066 = vmatprep.subr.bf16.mxu0 0
    %2067 = vmatpush1.bf16.msra.mxu0 %v2019
    %2068 = vmatprep.mubr.bf16.mxu0 %v2001
    %2069 = vmatmul.mubr.bf16.gmra.mrb[0].mxu0 %v2000
    %v2070 = vpop.f32.mrb[0].mxu0
    %v2071 = vadd.f32 0.0, %v2070
    %v2072 = vpop.f32.mrb[0].mxu0
    %v2073 = vpop.f32.mrb[0].mxu0
    %v2074 = vpop.f32.mrb[0].mxu0
    %2075 = vdwg.mxu0
    %2076 = vmatprep.subr.bf16.mxu0 0
    %2077 = vmatpush1.bf16.msra.mxu0 %v2020
    %2078 = vmatprep.subr.bf16.mxu0 0
    %2079 = vmatpush1.bf16.msra.mxu0 %v2021
    %2080 = vmatprep.subr.bf16.mxu0 0
    %2081 = vmatpush1.bf16.msra.mxu0 %v2022
    %2082 = vmatprep.subr.bf16.mxu0 0
    %2083 = vmatpush1.bf16.msra.mxu0 %v2023
    %2084 = vmatprep.subr.bf16.mxu0 0
    %2085 = vmatpush1.bf16.msra.mxu0 %v2024
    %2086 = vmatprep.subr.bf16.mxu0 0
    %2087 = vmatpush1.bf16.msra.mxu0 %v2025
    %2088 = vmatprep.subr.bf16.mxu0 0
    %2089 = vmatpush1.bf16.msra.mxu0 %v2026
    %2090 = vmatprep.subr.bf16.mxu0 0
    %2091 = vmatpush1.bf16.msra.mxu0 %v2027
    %2092 = vmatprep.subr.bf16.mxu0 0
    %2093 = vmatpush1.bf16.msra.mxu0 %v2028
    %2094 = vmatprep.subr.bf16.mxu0 0
    %2095 = vmatpush1.bf16.msra.mxu0 %v2029
    %2096 = vmatprep.subr.bf16.mxu0 0
    %2097 = vmatpush1.bf16.msra.mxu0 %v2030
    %2098 = vmatprep.subr.bf16.mxu0 0
    %2099 = vmatpush1.bf16.msra.mxu0 %v2031
    %2100 = vmatprep.subr.bf16.mxu0 0
    %2101 = vmatpush1.bf16.msra.mxu0 %v2032
    %2102 = vmatprep.subr.bf16.mxu0 0
    %2103 = vmatpush1.bf16.msra.mxu0 %v2033
    %2104 = vmatprep.subr.bf16.mxu0 0
    %2105 = vmatpush1.bf16.msra.mxu0 %v2034
    %2106 = vmatprep.subr.bf16.mxu0 0
    %2107 = vmatpush1.bf16.msra.mxu0 %v2035
    %2108 = vmatprep.mubr.bf16.mxu0 %v2003
    %2109 = vmatmul.mubr.bf16.gmra.mrb[0].mxu0 %v2002
    %v2110 = vpop.f32.mrb[0].mxu0
    %v2111 = vadd.f32 %v2071, %v2110
    %v2112 = vpop.f32.mrb[0].mxu0
    %v2113 = vpop.f32.mrb[0].mxu0
    %v2114 = vpop.f32.mrb[0].mxu0
    %2115 = vdwg.mxu0
    %v2116 = vrot.slane %v2111, 4
    %v2117 = vadd.f32 %v2111, %v2116
    %v2118 = vrot.slane %v2117, 2
    %v2119 = vadd.f32 %v2117, %v2118
    %v2120 = vrot.slane %v2119, 1
    %v2121 = vadd.f32 %v2119, %v2120
    %v2122 = vmul.f32 %v2111, %v2111
    %v2123 = vrot.slane %v2122, 4
    %v2124 = vadd.f32 %v2122, %v2123
    %v2125 = vrot.slane %v2124, 2
    %v2126 = vadd.f32 %v2124, %v2125
    %v2127 = vrot.slane %v2126, 1
    %v2128 = vadd.f32 %v2126, %v2127
    %v2129 = vmul.f32 %v2121, 0.125
    %v2130 = vmul.f32 %v2128, 0.125
    %v2131 = vmul.f32 %v2129, %v2129
    %v2132 = vsub.f32 %v2130, %v2131
    %v2133 = vmax.f32 %v2132, 0.0
    %v2134 = vadd.f32 %v2133, 1e-05
    %v2135 = vrsqrt.pop %v2134
    %v2136 = vmul.f32 %v147, %v2135
    %v2137 = vmul.f32 %v2129, %v2136
    %v2138 = vsub.f32 %v148, %v2137
    %v2139 = vmul.f32 %v2111, %v2136
    %v2140 = vadd.f32 %v2139, %v2138
    %v2141 = vmax.f32 %v2140, 0.0
    %v2142 = vpack.c.bf16 %v2141, %v2141
    %v2143 = vld [vmem:[#allocation4 + $0x100] sm:$0xff]
    %v2144 = vld [vmem:[#allocation4 + $0x108] sm:$0xff]
    %v2145 = vld [vmem:[#allocation4 + $0x110] sm:$0xff]
    %v2146 = vld [vmem:[#allocation4 + $0x118] sm:$0xff]
    %v2147 = vld [vmem:[#allocation4 + $0x120] sm:$0xff]
    %v2148 = vld [vmem:[#allocation4 + $0x128] sm:$0xff]
    %v2149 = vld [vmem:[#allocation4 + $0x130] sm:$0xff]
    %v2150 = vld [vmem:[#allocation4 + $0x138] sm:$0xff]
    %2151 = vmatprep.subr.bf16.mxu0 0
    %2152 = vmatpush1.bf16.msra.mxu0 %v2143
    %2153 = vmatprep.subr.bf16.mxu0 0
    %2154 = vmatpush1.bf16.msra.mxu0 %v2144
    %2155 = vmatprep.subr.bf16.mxu0 0
    %2156 = vmatpush1.bf16.msra.mxu0 %v2145
    %2157 = vmatprep.subr.bf16.mxu0 0
    %2158 = vmatpush1.bf16.msra.mxu0 %v2146
    %2159 = vmatprep.subr.bf16.mxu0 0
    %2160 = vmatpush1.bf16.msra.mxu0 %v2147
    %2161 = vmatprep.subr.bf16.mxu0 0
    %2162 = vmatpush1.bf16.msra.mxu0 %v2148
    %2163 = vmatprep.subr.bf16.mxu0 0
    %2164 = vmatpush1.bf16.msra.mxu0 %v2149
    %2165 = vmatprep.subr.bf16.mxu0 0
    %2166 = vmatpush1.bf16.msra.mxu0 %v2150
    %2167 = vmatprep.subr.bf16.mxu0 0
    %2168 = vmatpush1.bf16.msra.mxu0 0
    %2169 = vmatprep.subr.bf16.mxu0 0
    %2170 = vmatpush1.bf16.msra.mxu0 0
    %2171 = vmatprep.subr.bf16.mxu0 0
    %2172 = vmatpush1.bf16.msra.mxu0 0
    %2173 = vmatprep.subr.bf16.mxu0 0
    %2174 = vmatpush1.bf16.msra.mxu0 0
    %2175 = vmatprep.subr.bf16.mxu0 0
    %2176 = vmatpush1.bf16.msra.mxu0 0
    %2177 = vmatprep.subr.bf16.mxu0 0
    %2178 = vmatpush1.bf16.msra.mxu0 0
    %2179 = vmatprep.subr.bf16.mxu0 0
    %2180 = vmatpush1.bf16.msra.mxu0 0
    %2181 = vmatprep.subr.bf16.mxu0 0
    %2182 = vmatpush1.bf16.msra.mxu0 0
    %2183 = vmatprep.mubr.bf16.mxu0 0
    %2184 = vmatmul.mubr.bf16.gmra.mrb[0].mxu0 %v2142
    %v2185 = vpop.f32.mrb[0].mxu0
    %v2186 = vadd.f32 %v149, %v2185
    %v2187 = vpop.f32.mrb[0].mxu0
    %v2188 = vpop.f32.mrb[0].mxu0
    %v2189 = vpop.f32.mrb[0].mxu0
    %2190 = vdwg.mxu0
    %2191 = vst [vmem:[#allocation11] sm:$0xff] %v2186
    // Predicated region
    $region22: #{network_forward.1} parent=1 // pred_check
      _
    $region23: #{network_forward.1} parent=1 // pred_check_branch
      %2193 = sbr.rel (0) target = $region25
    $region24: #{network_forward.1} parent=1 // pred_region
      %s2195 = ssub.s32 128, 128
      %2196 = vsyncadd [#allocation8], %s2195
      %s2198 = sshll.u32 [#allocation11], 4
      %s2199 = int_to_ptr.vmem [resolvable:$true] %s2198
      %2201 = dma.vmem_to_hbm [thread:$0]  %s2199, 128, %s5, [#allocation8]
    $region25: #{network_forward.1} parent=1 // pred_fallthru
      _
    // Predicated region
    $region26: #{network_forward.1} parent=1 // pred_check
      _
    $region27: #{network_forward.1} parent=1 // pred_check_branch
      %2203 = sbr.rel (0) target = $region29
    $region28: #{network_forward.1} parent=1 // pred_region
      %2204 = dma.done [#allocation8], 128
    $region29: #{network_forward.1} parent=1 // pred_fallthru
      _
    %2205 = vsyncpa [#allocation7], 1
    %2206 = vsyncpa [#allocation10], 1
    %2207 = vsyncpa [#allocation8], 1
  %2208 = vsyncmov [#allocation5]
  %s2209 = vpop.sfrf %2208
  %p2210 = scmp.eq.s32.totalorder %s2209, 0
  %p2211 = pneg %p2210
  %2213 = shalt.err (%p2211)
  %s2214 = scalar_lea.sflag [#allocation5], 1
  %2215 = vsyncmov %s2214
  %s2216 = vpop.sfrf %2215
  %p2217 = scmp.eq.s32.totalorder %s2216, 0
  %p2218 = pneg %p2217
  %2220 = shalt.err (%p2218)
  %s2221 = scalar_lea.sflag [#allocation5], 2
  %2222 = vsyncmov %s2221
  %s2223 = vpop.sfrf %2222
  %p2224 = scmp.eq.s32.totalorder %s2223, 0
  %p2225 = pneg %p2224
  %2227 = shalt.err (%p2225)

</llo_original>
